<compile_context>
chip_gen: v7x
topology: tpu7x:2x2x1
jax: 0.10.0
libtpu: 0.0.40
codegen_flags: <defaults>
</compile_context>

<pallas_src>
import dataclasses
import numpy as np
import jax
import jax.numpy as jnp
from jax.experimental import pallas as pl
from jax.experimental.pallas import tpu as pltpu


def _round_up(n, m):
    return ((n + m - 1) // m) * m


# ----------------------------------------------------------------------------
# Kernel
# ----------------------------------------------------------------------------
def _make_kernel(num_layers, hid_p, n_out_p):
    """Fused late-residual MLP kernel: L+1 MXU launches per grid step.

    Ref order after x_ref:
      W1, b1, Wcat_1, b2, Wcat_2, b3, ..., Wcat_{L-1}, bL, WoutL, bout, o_ref
        W1     : (n_in_pad, nh1_p)               bf16
        b_i    : (1, nh_i_p)                     f32
        Wcat_i : (nh_i_p, nh_{i+1}_p + n_out_p)  bf16   [W_{i+1} | Wout_i]
        WoutL  : (nh_L_p, n_out_p)               bf16
        bout   : (1, n_out_p)                    f32
        o_ref  : (TM, n_out_p)                   f32
    """
    L = num_layers

    def kernel(x_ref, *args):
        o_ref = args[-1]
        bout_ref = args[-2]
        wout_last_ref = args[-3]

        # Output accumulator as a value: init from the broadcast output bias,
        # add each layer's contribution, single store at the end (no per-layer
        # o_ref VMEM round trips).
        acc = jnp.broadcast_to(bout_ref[...], o_ref.shape).astype(jnp.float32)

        # First hidden layer: h_1 = relu(x @ W1 + b1)
        h = x_ref[...]                                        # bf16 (TM, n_in_pad)
        z = jnp.dot(h, args[0][...], preferred_element_type=jnp.float32)
        h = jnp.maximum(z + args[1][...], 0.0).astype(jnp.bfloat16)

        # Middle layers: single fused dot per layer sharing the LHS h_i:
        #   h_i @ [W_{i+1} | Wout_i]  ->  split at the 128-aligned lane boundary.
        for i in range(L - 1):
            wcat_ref = args[2 + 2 * i]
            b_next_ref = args[3 + 2 * i]
            nh_next = hid_p[i + 1]
            zfull = jnp.dot(h, wcat_ref[...], preferred_element_type=jnp.float32)
            acc = acc + zfull[:, nh_next:]                    # late-residual tap of h_i
            h = jnp.maximum(zfull[:, :nh_next] + b_next_ref[...],
                            0.0).astype(jnp.bfloat16)

        # Last layer feeds only the output head.
        acc = acc + jnp.dot(h, wout_last_ref[...], preferred_element_type=jnp.float32)

        o_ref[...] = acc.astype(o_ref.dtype)

    return kernel


# ----------------------------------------------------------------------------
# One-time parameter packing (hoisted out of the per-call forward path)
# ----------------------------------------------------------------------------
@dataclasses.dataclass
class PackedParams:
    flat: list          # [W1, b1, Wcat_1, b2, ..., Wcat_{L-1}, bL, WoutL, bout]
    n_in: int
    n_in_pad: int
    hid: list
    hid_p: list
    n_out: int
    n_out_p: int


def pack_params(n_inputs, hidden_params, wout, bout, *, lane=128, sublane=16):
    """Pad / bf16-cast / concatenate weights once; reuse for every forward."""
    hid = [int(w.shape[1]) for (w, _) in hidden_params]
    L = len(hid)
    assert L >= 1, "residual mode needs at least one hidden layer"
    # TODO(synk): no-hidden-layer (single nn.Linear) branch not implemented.
    n_out = int(wout.shape[1])
    assert wout.shape[0] == sum(hid)

    # x's feature (K) dim only padded to the bf16 sublane pack (16), NOT 128:
    # x is the only array streamed per grid step, so this avoids an 8x HBM
    # over-read.  Hidden / output dims are lane-padded to 128 (MXU lane-dense,
    # lane-aligned split boundaries for the fused dots).
    n_in_pad = _round_up(n_inputs, sublane)
    hid_p = [_round_up(h, lane) for h in hid]
    n_out_p = _round_up(n_out, lane)

    offs = np.cumsum([0] + hid)                  # W_out row offset per layer tap

    flat = []

    # First layer.
    w0, b0 = hidden_params[0]
    w0p = (jnp.zeros((n_in_pad, hid_p[0]), jnp.float32)
           .at[:n_inputs, :hid[0]].set(w0).astype(jnp.bfloat16))
    b0p = jnp.zeros((1, hid_p[0]), jnp.float32).at[:, :hid[0]].set(
        jnp.asarray(b0).reshape(1, hid[0]))
    flat += [w0p, b0p]

    # Middle layers: Wcat_i = [W_{i+1} | Wout_i]  (both blocks 128-padded).
    for i in range(L - 1):
        w_next, b_next = hidden_params[i + 1]
        nh_i, nh_n = hid[i], hid[i + 1]
        wcat = jnp.zeros((hid_p[i], hid_p[i + 1] + n_out_p), jnp.float32)
        wcat = wcat.at[:nh_i, :nh_n].set(w_next)
        wcat = wcat.at[:nh_i, hid_p[i + 1]:hid_p[i + 1] + n_out].set(
            wout[int(offs[i]):int(offs[i]) + nh_i, :])
        bnp = jnp.zeros((1, hid_p[i + 1]), jnp.float32).at[:, :nh_n].set(
            jnp.asarray(b_next).reshape(1, nh_n))
        flat += [wcat.astype(jnp.bfloat16), bnp]

    # Last layer's output-head block + output bias.
    nh_last = hid[-1]
    wlp = (jnp.zeros((hid_p[-1], n_out_p), jnp.float32)
           .at[:nh_last, :n_out].set(wout[int(offs[-2]):int(offs[-2]) + nh_last, :])
           .astype(jnp.bfloat16))
    boutp = jnp.zeros((1, n_out_p), jnp.float32).at[:, :n_out].set(
        jnp.asarray(bout).reshape(1, n_out))
    flat += [wlp, boutp]

    return PackedParams(flat, n_inputs, n_in_pad, hid, hid_p, n_out, n_out_p)


# ----------------------------------------------------------------------------
# Forward
# ----------------------------------------------------------------------------
def _choose_tm(M, tm_max=512):
    """Batch tile: multiple of 16 (bf16 sublane pack), <= tm_max; when the
    batch fits in two tiles pick two balanced grid steps (v7x megacore)."""
    m16 = _round_up(max(M, 1), 16)
    if m16 <= 16:
        return 16
    if m16 <= 2 * tm_max:
        return _round_up((m16 + 1) // 2, 16)
    return tm_max


def late_residual_forward(x, packed: PackedParams, *, tm_max=512):
    """NNet.forward (residual mode) as a single fused Pallas kernel."""
    M, n_in = x.shape
    assert n_in == packed.n_in
    L = len(packed.hid)

    TM = _choose_tm(M, tm_max)
    M_p = _round_up(M, TM)
    grid = (M_p // TM,)

    # Per-call work is only the x pad/cast (params are pre-packed).
    xp = (jnp.zeros((M_p, packed.n_in_pad), jnp.float32)
          .at[:M, :n_in].set(x).astype(jnp.bfloat16))

    # x / out move along the batch grid axis; parameters are grid-invariant
    # (constant index_map -> fetched once, VMEM-resident).
    x_spec = pl.BlockSpec((TM, packed.n_in_pad), lambda i: (i, 0))
    out_spec = pl.BlockSpec((TM, packed.n_out_p), lambda i: (i, 0))
    # TODO(synk): pl.Buffered(1) on the grid-invariant specs would halve their
    # resident VMEM on v7x; left at default buffering to avoid compile risk.
    const_specs = [pl.BlockSpec(a.shape, lambda i: (0, 0)) for a in packed.flat]

    # ---- VMEM budget: generation-aware (no blanket 64 MiB clamp) ----------
    param_bytes = 2 * sum(int(a.size) * a.dtype.itemsize for a in packed.flat)
    tile_bytes = 2 * TM * packed.n_in_pad * 2 + 2 * TM * packed.n_out_p * 4
    act_bytes = 4 * TM * max(packed.hid_p + [packed.n_out_p]) * 4
    need = param_bytes + tile_bytes + act_bytes + (4 << 20)
    try:
        phys = int(pltpu.get_tpu_info().vmem_capacity_bytes)
    except Exception:
        phys = 64 << 20                      # conservative (v7x-safe) fallback
    cap = phys * 7 // 8                      # ~112 MiB v5e/v6e, ~56 MiB v7x
    # TODO(synk): if `need` ever exceeds `cap` (very large models), switch to
    # layer/K tiling instead of clamping the limit.
    vmem_limit = int(min(max(need, 32 << 20), cap))

    out = pl.pallas_call(
        _make_kernel(L, packed.hid_p, packed.n_out_p),
        out_shape=jax.ShapeDtypeStruct((M_p, packed.n_out_p), jnp.float32),
        grid=grid,
        in_specs=[x_spec] + const_specs,
        out_specs=out_spec,
        compiler_params=pltpu.CompilerParams(
            dimension_semantics=("parallel",),   # shard batch tiles across TCs
            vmem_limit_bytes=vmem_limit,
        ),
    )(xp, *packed.flat)

    return out[:M, :packed.n_out]


# ----------------------------------------------------------------------------
# Init & references
# ----------------------------------------------------------------------------
def init_params(key, n_inputs, n_hiddens_list, n_outputs):
    """Deterministic PyTorch-Linear-style (uniform +-1/sqrt(fan_in)) init."""
    params = []
    fan_in = n_inputs
    keys = jax.random.split(key, len(n_hiddens_list) + 1)
    for k, nh in zip(keys[:-1], n_hiddens_list):
        bound = 1.0 / np.sqrt(fan_in)
        kw, kb = jax.random.split(k)
        w = jax.random.uniform(kw, (fan_in, nh), jnp.float32, -bound, bound)
        b = jax.random.uniform(kb, (1, nh), jnp.float32, -bound, bound)
        params.append((w, b))
        fan_in = nh
    total = sum(n_hiddens_list)
    bound = 1.0 / np.sqrt(total)
    kw, kb = jax.random.split(keys[-1])
    wout = jax.random.uniform(kw, (total, n_outputs), jnp.float32, -bound, bound)
    bout = jax.random.uniform(kb, (1, n_outputs), jnp.float32, -bound, bound)
    return params, wout, bout


def reference_forward_f32(x, hidden_params, wout, bout):
    """Pure-JAX fp32 reference matching NNet.forward (residual mode) exactly."""
    residual_outs = []
    h = x
    for w, b in hidden_params:
        h = jnp.maximum(h @ w + b, 0.0)
        residual_outs.append(h)          # ResidualBlock / final tap collects h
    cat = jnp.concatenate(residual_outs, axis=1)
    return cat @ wout + bout             # output_layer on concatenated taps


def reference_forward_bf16(x, hidden_params, wout, bout):
    """Same math with the kernel's bf16-operand / f32-accumulate matmuls."""
    residual_outs = []
    h = x.astype(jnp.bfloat16)
    for w, b in hidden_params:
        z = jnp.dot(h, w.astype(jnp.bfloat16), preferred_element_type=jnp.float32)
        h32 = jnp.maximum(z + b, 0.0)
        h = h32.astype(jnp.bfloat16)
        residual_outs.append(h)
    cat = jnp.concatenate(residual_outs, axis=1)
    return jnp.dot(cat, wout.astype(jnp.bfloat16),
                   preferred_element_type=jnp.float32) + bout


# ----------------------------------------------------------------------------
# Demo
# ----------------------------------------------------------------------------
if __name__ == "__main__":
    # Small shapes (MxN input convention of the module).  M=260 exercises the
    # balanced 2-step batch grid (TM=144) plus row padding; n_inputs=16 keeps
    # the streamed x at its natural (unpadded-to-128) width.
    M, n_inputs = 260, 16
    n_hiddens_list = [32, 48, 32]
    n_outputs = 8

    key = jax.random.PRNGKey(0)
    kx, kp = jax.random.split(key)
    x = jax.random.normal(kx, (M, n_inputs), jnp.float32)
    hidden_params, wout, bout = init_params(kp, n_inputs, n_hiddens_list, n_outputs)

    # One-time parameter packing (hoisted out of the per-call path).
    packed = pack_params(n_inputs, hidden_params, wout, bout)

    out = late_residual_forward(x, packed)
    out = jax.block_until_ready(out)
    assert out.shape == (M, n_outputs)

    # Kernel correctness vs. a reference using the identical bf16/f32 matmul
    # recipe (tight tolerance) ...
    ref_bf16 = reference_forward_bf16(x, hidden_params, wout, bout)
    assert jnp.allclose(out, ref_bf16, atol=2e-3, rtol=2e-3), \
        "mismatch vs bf16-matmul JAX reference"

    # ... and module-semantics check vs. the pure fp32 NNet forward (loosened
    # tolerance because the kernel uses bf16 MXU operands).
    ref_f32 = reference_forward_f32(x, hidden_params, wout, bout)
    assert jnp.allclose(out, ref_f32, atol=5e-2, rtol=5e-2), \
        "mismatch vs fp32 NNet reference"

    print("KERNEL_OK")
</pallas_src>

<mosaic_0001>
module attributes {stable_mosaic.version = 11 : i64} {
  func.func @kernel(%arg0: i32, %arg1: memref<144x16xbf16, #tpu.memory_space<vmem>>, %arg2: memref<16x128xbf16, #tpu.memory_space<vmem>>, %arg3: memref<1x128xf32, #tpu.memory_space<vmem>>, %arg4: memref<128x256xbf16, #tpu.memory_space<vmem>>, %arg5: memref<1x128xf32, #tpu.memory_space<vmem>>, %arg6: memref<128x256xbf16, #tpu.memory_space<vmem>>, %arg7: memref<1x128xf32, #tpu.memory_space<vmem>>, %arg8: memref<128x128xbf16, #tpu.memory_space<vmem>>, %arg9: memref<1x128xf32, #tpu.memory_space<vmem>>, %arg10: memref<144x128xf32, #tpu.memory_space<vmem>>) attributes {dimension_semantics = [#tpu.dimension_semantics<parallel>], iteration_bounds = array<i64: 2>, scalar_prefetch = 0 : i64, scratch_operands = 0 : i64, tpu.core_type = #tpu.core_type<tc>, window_params = [{transform_indices = @transform_0, window_bounds = array<i64: 144, 16>}, {pipeline_mode = #tpu.pipeline_mode<synchronous>, transform_indices = @transform_1, window_bounds = array<i64: 16, 128>}, {pipeline_mode = #tpu.pipeline_mode<synchronous>, transform_indices = @transform_2, window_bounds = array<i64: 1, 128>}, {pipeline_mode = #tpu.pipeline_mode<synchronous>, transform_indices = @transform_3, window_bounds = array<i64: 128, 256>}, {pipeline_mode = #tpu.pipeline_mode<synchronous>, transform_indices = @transform_4, window_bounds = array<i64: 1, 128>}, {pipeline_mode = #tpu.pipeline_mode<synchronous>, transform_indices = @transform_5, window_bounds = array<i64: 128, 256>}, {pipeline_mode = #tpu.pipeline_mode<synchronous>, transform_indices = @transform_6, window_bounds = array<i64: 1, 128>}, {pipeline_mode = #tpu.pipeline_mode<synchronous>, transform_indices = @transform_7, window_bounds = array<i64: 128, 128>}, {pipeline_mode = #tpu.pipeline_mode<synchronous>, transform_indices = @transform_8, window_bounds = array<i64: 1, 128>}, {transform_indices = @transform_9, window_bounds = array<i64: 144, 128>}]} {
    %c0 = arith.constant 0 : index
    %c0_0 = arith.constant 0 : index
    %0 = vector.load %arg9[%c0, %c0_0] : memref<1x128xf32, #tpu.memory_space<vmem>>, vector<1x128xf32>
    %1 = vector.shape_cast %0 : vector<1x128xf32> to vector<1x128xf32>
    %2 = vector.broadcast %1 : vector<1x128xf32> to vector<144x128xf32>
    %c0_1 = arith.constant 0 : index
    %c0_2 = arith.constant 0 : index
    %3 = vector.load %arg1[%c0_1, %c0_2] : memref<144x16xbf16, #tpu.memory_space<vmem>>, vector<144x16xbf16>
    %c0_3 = arith.constant 0 : index
    %c0_4 = arith.constant 0 : index
    %4 = vector.load %arg2[%c0_3, %c0_4] : memref<16x128xbf16, #tpu.memory_space<vmem>>, vector<16x128xbf16>
    %cst = arith.constant dense<0.000000e+00> : vector<144x128xf32>
    %5 = tpu.matmul %3, %4, %cst {dimension_numbers = #tpu.dot_dimension_numbers<[1], [0], [0], [1], [0, 0, 1, 1], [], []>} : vector<144x16xbf16>, vector<16x128xbf16>, vector<144x128xf32> -> vector<144x128xf32>
    %c0_5 = arith.constant 0 : index
    %c0_6 = arith.constant 0 : index
    %6 = vector.load %arg3[%c0_5, %c0_6] : memref<1x128xf32, #tpu.memory_space<vmem>>, vector<1x128xf32>
    %7 = vector.broadcast %6 : vector<1x128xf32> to vector<144x128xf32>
    %8 = arith.addf %5, %7 : vector<144x128xf32>
    %cst_7 = arith.constant 0.000000e+00 : f32
    %9 = vector.broadcast %cst_7 : f32 to vector<144x128xf32>
    %10 = arith.maximumf %8, %9 : vector<144x128xf32>
    %11 = arith.truncf %10 : vector<144x128xf32> to vector<144x128xbf16>
    %c0_8 = arith.constant 0 : index
    %c0_9 = arith.constant 0 : index
    %12 = vector.load %arg4[%c0_8, %c0_9] : memref<128x256xbf16, #tpu.memory_space<vmem>>, vector<128x256xbf16>
    %cst_10 = arith.constant dense<0.000000e+00> : vector<144x256xf32>
    %13 = tpu.matmul %11, %12, %cst_10 {dimension_numbers = #tpu.dot_dimension_numbers<[1], [0], [0], [1], [0, 0, 1, 1], [], []>} : vector<144x128xbf16>, vector<128x256xbf16>, vector<144x256xf32> -> vector<144x256xf32>
    %14 = vector.extract_strided_slice %13 {offsets = [0, 128], sizes = [144, 128], strides = [1, 1]} : vector<144x256xf32> to vector<144x128xf32>
    %15 = arith.addf %2, %14 : vector<144x128xf32>
    %16 = vector.extract_strided_slice %13 {offsets = [0, 0], sizes = [144, 128], strides = [1, 1]} : vector<144x256xf32> to vector<144x128xf32>
    %c0_11 = arith.constant 0 : index
    %c0_12 = arith.constant 0 : index
    %17 = vector.load %arg5[%c0_11, %c0_12] : memref<1x128xf32, #tpu.memory_space<vmem>>, vector<1x128xf32>
    %18 = vector.broadcast %17 : vector<1x128xf32> to vector<144x128xf32>
    %19 = arith.addf %16, %18 : vector<144x128xf32>
    %cst_13 = arith.constant 0.000000e+00 : f32
    %20 = vector.broadcast %cst_13 : f32 to vector<144x128xf32>
    %21 = arith.maximumf %19, %20 : vector<144x128xf32>
    %22 = arith.truncf %21 : vector<144x128xf32> to vector<144x128xbf16>
    %c0_14 = arith.constant 0 : index
    %c0_15 = arith.constant 0 : index
    %23 = vector.load %arg6[%c0_14, %c0_15] : memref<128x256xbf16, #tpu.memory_space<vmem>>, vector<128x256xbf16>
    %cst_16 = arith.constant dense<0.000000e+00> : vector<144x256xf32>
    %24 = tpu.matmul %22, %23, %cst_16 {dimension_numbers = #tpu.dot_dimension_numbers<[1], [0], [0], [1], [0, 0, 1, 1], [], []>} : vector<144x128xbf16>, vector<128x256xbf16>, vector<144x256xf32> -> vector<144x256xf32>
    %25 = vector.extract_strided_slice %24 {offsets = [0, 128], sizes = [144, 128], strides = [1, 1]} : vector<144x256xf32> to vector<144x128xf32>
    %26 = arith.addf %15, %25 : vector<144x128xf32>
    %27 = vector.extract_strided_slice %24 {offsets = [0, 0], sizes = [144, 128], strides = [1, 1]} : vector<144x256xf32> to vector<144x128xf32>
    %c0_17 = arith.constant 0 : index
    %c0_18 = arith.constant 0 : index
    %28 = vector.load %arg7[%c0_17, %c0_18] : memref<1x128xf32, #tpu.memory_space<vmem>>, vector<1x128xf32>
    %29 = vector.broadcast %28 : vector<1x128xf32> to vector<144x128xf32>
    %30 = arith.addf %27, %29 : vector<144x128xf32>
    %cst_19 = arith.constant 0.000000e+00 : f32
    %31 = vector.broadcast %cst_19 : f32 to vector<144x128xf32>
    %32 = arith.maximumf %30, %31 : vector<144x128xf32>
    %33 = arith.truncf %32 : vector<144x128xf32> to vector<144x128xbf16>
    %c0_20 = arith.constant 0 : index
    %c0_21 = arith.constant 0 : index
    %34 = vector.load %arg8[%c0_20, %c0_21] : memref<128x128xbf16, #tpu.memory_space<vmem>>, vector<128x128xbf16>
    %cst_22 = arith.constant dense<0.000000e+00> : vector<144x128xf32>
    %35 = tpu.matmul %33, %34, %cst_22 {dimension_numbers = #tpu.dot_dimension_numbers<[1], [0], [0], [1], [0, 0, 1, 1], [], []>} : vector<144x128xbf16>, vector<128x128xbf16>, vector<144x128xf32> -> vector<144x128xf32>
    %36 = arith.addf %26, %35 : vector<144x128xf32>
    %c0_23 = arith.constant 0 : index
    %c0_24 = arith.constant 0 : index
    %37 = vector.load %arg10[%c0_23, %c0_24] : memref<144x128xf32, #tpu.memory_space<vmem>>, vector<144x128xf32>
    tpu.vector_store %arg10[%c0_23, %c0_24], %36 {strides = array<i32>} : memref<144x128xf32, #tpu.memory_space<vmem>>, vector<144x128xf32>,
    return
  }
  func.func @transform_0(%arg0: i32) -> (i32, i32) {
    %c0_i32 = arith.constant 0 : i32
    %c0_i32_0 = arith.constant 0 : i32
    return %arg0, %c0_i32 : i32, i32
  }
  func.func @transform_1(%arg0: i32) -> (i32, i32) {
    %c0_i32 = arith.constant 0 : i32
    %c0_i32_0 = arith.constant 0 : i32
    %c0_i32_1 = arith.constant 0 : i32
    return %c0_i32, %c0_i32_0 : i32, i32
  }
  func.func @transform_2(%arg0: i32) -> (i32, i32) {
    %c0_i32 = arith.constant 0 : i32
    %c0_i32_0 = arith.constant 0 : i32
    %c0_i32_1 = arith.constant 0 : i32
    return %c0_i32, %c0_i32_0 : i32, i32
  }
  func.func @transform_3(%arg0: i32) -> (i32, i32) {
    %c0_i32 = arith.constant 0 : i32
    %c0_i32_0 = arith.constant 0 : i32
    %c0_i32_1 = arith.constant 0 : i32
    return %c0_i32, %c0_i32_0 : i32, i32
  }
  func.func @transform_4(%arg0: i32) -> (i32, i32) {
    %c0_i32 = arith.constant 0 : i32
    %c0_i32_0 = arith.constant 0 : i32
    %c0_i32_1 = arith.constant 0 : i32
    return %c0_i32, %c0_i32_0 : i32, i32
  }
  func.func @transform_5(%arg0: i32) -> (i32, i32) {
    %c0_i32 = arith.constant 0 : i32
    %c0_i32_0 = arith.constant 0 : i32
    %c0_i32_1 = arith.constant 0 : i32
    return %c0_i32, %c0_i32_0 : i32, i32
  }
  func.func @transform_6(%arg0: i32) -> (i32, i32) {
    %c0_i32 = arith.constant 0 : i32
    %c0_i32_0 = arith.constant 0 : i32
    %c0_i32_1 = arith.constant 0 : i32
    return %c0_i32, %c0_i32_0 : i32, i32
  }
  func.func @transform_7(%arg0: i32) -> (i32, i32) {
    %c0_i32 = arith.constant 0 : i32
    %c0_i32_0 = arith.constant 0 : i32
    %c0_i32_1 = arith.constant 0 : i32
    return %c0_i32, %c0_i32_0 : i32, i32
  }
  func.func @transform_8(%arg0: i32) -> (i32, i32) {
    %c0_i32 = arith.constant 0 : i32
    %c0_i32_0 = arith.constant 0 : i32
    %c0_i32_1 = arith.constant 0 : i32
    return %c0_i32, %c0_i32_0 : i32, i32
  }
  func.func @transform_9(%arg0: i32) -> (i32, i32) {
    %c0_i32 = arith.constant 0 : i32
    %c0_i32_0 = arith.constant 0 : i32
    return %arg0, %c0_i32 : i32, i32
  }
}

</mosaic_0001>

<llo_original>
// kernel: tpu_custom_call.1
$region0: #{tpu_custom_call.1}
  #allocation0 [shape = 'u32[]', space=smem, size = 0x4, offset = 0x4, fixed_abs, tag = 'smem constant byte address 0x4 - core index']
  #allocation1 [shape = 'u32[144,128]{1,0:T(1,128)}', space=vmem, size = 0x12000, scoped, tag = 'internal scratch']
  %s0 = inlined_call_operand.vmem [shape: bf16[288,16], index: 0, kind: input, shape index: {}]
  %s1 = inlined_call_operand.hbm [shape: bf16[16,128], index: 1, kind: input, shape index: {}]
  %s2 = inlined_call_operand.vmem [shape: f32[1,128], index: 2, kind: input, shape index: {}]
  %s3 = inlined_call_operand.vmem [shape: bf16[128,256], index: 3, kind: input, shape index: {}]
  %s4 = inlined_call_operand.vmem [shape: f32[1,128], index: 4, kind: input, shape index: {}]
  %s5 = inlined_call_operand.hbm [shape: bf16[128,256], index: 5, kind: input, shape index: {}]
  %s6 = inlined_call_operand.hbm [shape: f32[1,128], index: 6, kind: input, shape index: {}]
  %s7 = inlined_call_operand.vmem [shape: bf16[128,128], index: 7, kind: input, shape index: {}]
  %s8 = inlined_call_operand.vmem [shape: f32[1,128], index: 8, kind: input, shape index: {}]
  %s9 = inlined_call_operand.hbm [shape: f32[288,128], index: 9, kind: output, shape index: {}]
  %s10 = sld [smem:[#allocation0]]
  $region81: #{tpu_custom_call.1} parent=0
    _
  %s12 = ssub.s32 1, %s10
  %s13 = scalar_select 0, %s12, %s10
  $region1: #{tpu_custom_call.1} parent=0
    #allocation2 [shape = 'u8[4096]{0}', space=vmem, size = 0x1000, scoped, tag = 'input window, operand 1, single buffered']
    #allocation3 [shape = 's32[2]{0}', space=sflag, size = 0x8, scoped, tag = 'scoped memory for tpu_custom_call.1']
    #allocation4 [shape = 's32[2]{0}', space=sflag, size = 0x8, scoped, tag = 'scoped memory for tpu_custom_call.1']
    #allocation5 [shape = 'u8[65536]{0}', space=vmem, size = 0x10000, scoped, tag = 'input window, operand 5, single buffered']
    #allocation6 [shape = 's32[1]{0}', space=sflag, size = 0x4, scoped, tag = 'scoped memory for tpu_custom_call.1']
    #allocation7 [shape = 'u8[512]{0}', space=vmem, size = 0x400, scoped, tag = 'input window, operand 6, single buffered']
    #allocation8 [shape = 'u8[147456]{0}', space=vmem, size = 0x24000, scoped, tag = 'output window, operand 0']
    %14 = vsyncpa [#allocation3], 0
    %15 = vsyncpa [#allocation6], 0
    %16 = vsyncpa [#allocation4], 0
    %s17 = scalar_lea.sflag [#allocation4], 1
    %18 = vsyncpa %s17, 0
    loop: start=0, step=1, limit=4
    $region2: #{tpu_custom_call.1} parent=1 // loop_pre_header
      _
    $region3: #{tpu_custom_call.1} parent=1 // loop_header
      %s20 = sphi 0, %s24
      %p21 = scmp.ge.s32.totalorder %s20, 4
      %s30 = sphi 0, %s32
      %s33 = sphi 0, %s30
      %s34 = sphi 0, %s33
      %s50 = sphi 0, %s34
      %s54 = sphi 0, %s54
      %s56 = sphi 0, %s54
      %s57 = sphi 0, %s56
      %s71 = sphi 0, %s57
      %s75 = sphi 0, %s75
      %s77 = sphi 0, %s75
      %s78 = sphi 0, %s77
      %s92 = sphi 0, %s78
      %s96 = sphi 0, %s96
      %s98 = sphi 0, %s96
      %s99 = sphi 0, %s98
      %s113 = sphi 0, %s99
      %s117 = sphi 0, %s117
      %s119 = sphi 0, %s117
      %s120 = sphi 0, %s119
      %s134 = sphi 0, %s120
      %s138 = sphi 0, %s138
      %s140 = sphi 0, %s138
      %s141 = sphi 0, %s140
      %s155 = sphi 0, %s141
      %s159 = sphi 0, %s159
      %s161 = sphi 0, %s159
      %s162 = sphi 0, %s161
      %s176 = sphi 0, %s162
      %s180 = sphi 0, %s180
      %s182 = sphi 0, %s180
      %s183 = sphi 0, %s182
      %s197 = sphi 0, %s183
      %s201 = sphi 0, %s201
      %s203 = sphi 0, %s201
      %s204 = sphi 0, %s203
      %s218 = sphi 0, %s204
      %s224 = sphi 0, %s226
      %s227 = sphi 0, %s224
      %s228 = sphi 0, %s227
      %s244 = sphi 0, %s228
    $region4: #{tpu_custom_call.1} parent=1 // loop_header_branch
      %23 = sbr.rel (%p21) target = $region8
    $region5: #{tpu_custom_call.1} parent=1 // loop_body
      %s25 = ssub.s32 %s20, 1
      %s26 = ssub.s32 %s20, 2
      %s27 = sadd.s32 %s20, 1
      %s28 = ssub.s32 %s20, %s27
      %p29 = scmp.eq.s32.totalorder %s28, 0
      %s31 = sadd.s32 %s30, 1
      %s32 = scalar_select %p29, %s30, %s31
      %p35 = pneg %p29
      %p36 = scmp.eq.s32.totalorder %s20, 1
      %p37 = por %p35, %p36
      %p38 = scmp.ne.s32.totalorder %s30, %s33
      %p39 = scmp.eq.s32.totalorder %s20, 0
      %p40 = por %p38, %p39
      %p41 = scmp.ne.s32.totalorder %s30, %s33
      %p42 = scmp.eq.s32.totalorder %s25, 1
      %p43 = por %p41, %p42
      %p44 = scmp.ne.s32.totalorder %s33, %s34
      %p45 = scmp.eq.s32.totalorder %s25, 0
      %p46 = por %p44, %p45
      %p47 = scmp.ne.s32.totalorder %s33, %s34
      %p48 = scmp.eq.s32.totalorder %s26, 1
      %p49 = por %p47, %p48
      %p51 = scmp.ne.s32.totalorder %s34, %s50
      %p52 = scmp.eq.s32.totalorder %s26, 0
      %p53 = por %p51, %p52
      %s55 = sadd.s32 %s54, 1
      %p58 = scmp.eq.s32.totalorder %s20, 1
      %p59 = scmp.ne.s32.totalorder %s54, %s56
      %p60 = scmp.eq.s32.totalorder %s20, 0
      %p61 = por %p59, %p60
      %p62 = scmp.ne.s32.totalorder %s54, %s56
      %p63 = scmp.eq.s32.totalorder %s25, 1
      %p64 = por %p62, %p63
      %p65 = scmp.ne.s32.totalorder %s56, %s57
      %p66 = scmp.eq.s32.totalorder %s25, 0
      %p67 = por %p65, %p66
      %p68 = scmp.ne.s32.totalorder %s56, %s57
      %p69 = scmp.eq.s32.totalorder %s26, 1
      %p70 = por %p68, %p69
      %p72 = scmp.ne.s32.totalorder %s57, %s71
      %p73 = scmp.eq.s32.totalorder %s26, 0
      %p74 = por %p72, %p73
      %s76 = sadd.s32 %s75, 1
      %p79 = scmp.eq.s32.totalorder %s20, 1
      %p80 = scmp.ne.s32.totalorder %s75, %s77
      %p81 = scmp.eq.s32.totalorder %s20, 0
      %p82 = por %p80, %p81
      %p83 = scmp.ne.s32.totalorder %s75, %s77
      %p84 = scmp.eq.s32.totalorder %s25, 1
      %p85 = por %p83, %p84
      %p86 = scmp.ne.s32.totalorder %s77, %s78
      %p87 = scmp.eq.s32.totalorder %s25, 0
      %p88 = por %p86, %p87
      %p89 = scmp.ne.s32.totalorder %s77, %s78
      %p90 = scmp.eq.s32.totalorder %s26, 1
      %p91 = por %p89, %p90
      %p93 = scmp.ne.s32.totalorder %s78, %s92
      %p94 = scmp.eq.s32.totalorder %s26, 0
      %p95 = por %p93, %p94
      %s97 = sadd.s32 %s96, 1
      %p100 = scmp.eq.s32.totalorder %s20, 1
      %p101 = scmp.ne.s32.totalorder %s96, %s98
      %p102 = scmp.eq.s32.totalorder %s20, 0
      %p103 = por %p101, %p102
      %p104 = scmp.ne.s32.totalorder %s96, %s98
      %p105 = scmp.eq.s32.totalorder %s25, 1
      %p106 = por %p104, %p105
      %p107 = scmp.ne.s32.totalorder %s98, %s99
      %p108 = scmp.eq.s32.totalorder %s25, 0
      %p109 = por %p107, %p108
      %p110 = scmp.ne.s32.totalorder %s98, %s99
      %p111 = scmp.eq.s32.totalorder %s26, 1
      %p112 = por %p110, %p111
      %p114 = scmp.ne.s32.totalorder %s99, %s113
      %p115 = scmp.eq.s32.totalorder %s26, 0
      %p116 = por %p114, %p115
      %s118 = sadd.s32 %s117, 1
      %p121 = scmp.eq.s32.totalorder %s20, 1
      %p122 = scmp.ne.s32.totalorder %s117, %s119
      %p123 = scmp.eq.s32.totalorder %s20, 0
      %p124 = por %p122, %p123
      %p125 = scmp.ne.s32.totalorder %s117, %s119
      %p126 = scmp.eq.s32.totalorder %s25, 1
      %p127 = por %p125, %p126
      %p128 = scmp.ne.s32.totalorder %s119, %s120
      %p129 = scmp.eq.s32.totalorder %s25, 0
      %p130 = por %p128, %p129
      %p131 = scmp.ne.s32.totalorder %s119, %s120
      %p132 = scmp.eq.s32.totalorder %s26, 1
      %p133 = por %p131, %p132
      %p135 = scmp.ne.s32.totalorder %s120, %s134
      %p136 = scmp.eq.s32.totalorder %s26, 0
      %p137 = por %p135, %p136
      %s139 = sadd.s32 %s138, 1
      %p142 = scmp.eq.s32.totalorder %s20, 1
      %p143 = scmp.ne.s32.totalorder %s138, %s140
      %p144 = scmp.eq.s32.totalorder %s20, 0
      %p145 = por %p143, %p144
      %p146 = scmp.ne.s32.totalorder %s138, %s140
      %p147 = scmp.eq.s32.totalorder %s25, 1
      %p148 = por %p146, %p147
      %p149 = scmp.ne.s32.totalorder %s140, %s141
      %p150 = scmp.eq.s32.totalorder %s25, 0
      %p151 = por %p149, %p150
      %p152 = scmp.ne.s32.totalorder %s140, %s141
      %p153 = scmp.eq.s32.totalorder %s26, 1
      %p154 = por %p152, %p153
      %p156 = scmp.ne.s32.totalorder %s141, %s155
      %p157 = scmp.eq.s32.totalorder %s26, 0
      %p158 = por %p156, %p157
      %s160 = sadd.s32 %s159, 1
      %p163 = scmp.eq.s32.totalorder %s20, 1
      %p164 = scmp.ne.s32.totalorder %s159, %s161
      %p165 = scmp.eq.s32.totalorder %s20, 0
      %p166 = por %p164, %p165
      %p167 = scmp.ne.s32.totalorder %s159, %s161
      %p168 = scmp.eq.s32.totalorder %s25, 1
      %p169 = por %p167, %p168
      %p170 = scmp.ne.s32.totalorder %s161, %s162
      %p171 = scmp.eq.s32.totalorder %s25, 0
      %p172 = por %p170, %p171
      %p173 = scmp.ne.s32.totalorder %s161, %s162
      %p174 = scmp.eq.s32.totalorder %s26, 1
      %p175 = por %p173, %p174
      %p177 = scmp.ne.s32.totalorder %s162, %s176
      %p178 = scmp.eq.s32.totalorder %s26, 0
      %p179 = por %p177, %p178
      %s181 = sadd.s32 %s180, 1
      %p184 = scmp.eq.s32.totalorder %s20, 1
      %p185 = scmp.ne.s32.totalorder %s180, %s182
      %p186 = scmp.eq.s32.totalorder %s20, 0
      %p187 = por %p185, %p186
      %p188 = scmp.ne.s32.totalorder %s180, %s182
      %p189 = scmp.eq.s32.totalorder %s25, 1
      %p190 = por %p188, %p189
      %p191 = scmp.ne.s32.totalorder %s182, %s183
      %p192 = scmp.eq.s32.totalorder %s25, 0
      %p193 = por %p191, %p192
      %p194 = scmp.ne.s32.totalorder %s182, %s183
      %p195 = scmp.eq.s32.totalorder %s26, 1
      %p196 = por %p194, %p195
      %p198 = scmp.ne.s32.totalorder %s183, %s197
      %p199 = scmp.eq.s32.totalorder %s26, 0
      %p200 = por %p198, %p199
      %s202 = sadd.s32 %s201, 1
      %p205 = scmp.eq.s32.totalorder %s20, 1
      %p206 = scmp.ne.s32.totalorder %s201, %s203
      %p207 = scmp.eq.s32.totalorder %s20, 0
      %p208 = por %p206, %p207
      %p209 = scmp.ne.s32.totalorder %s201, %s203
      %p210 = scmp.eq.s32.totalorder %s25, 1
      %p211 = por %p209, %p210
      %p212 = scmp.ne.s32.totalorder %s203, %s204
      %p213 = scmp.eq.s32.totalorder %s25, 0
      %p214 = por %p212, %p213
      %p215 = scmp.ne.s32.totalorder %s203, %s204
      %p216 = scmp.eq.s32.totalorder %s26, 1
      %p217 = por %p215, %p216
      %p219 = scmp.ne.s32.totalorder %s204, %s218
      %p220 = scmp.eq.s32.totalorder %s26, 0
      %p221 = por %p219, %p220
      %s222 = ssub.s32 %s20, %s27
      %p223 = scmp.eq.s32.totalorder %s222, 0
      %s225 = sadd.s32 %s224, 1
      %s226 = scalar_select %p223, %s224, %s225
      %p229 = pneg %p223
      %p230 = scmp.eq.s32.totalorder %s20, 1
      %p231 = por %p229, %p230
      %p232 = scmp.ne.s32.totalorder %s224, %s227
      %p233 = scmp.eq.s32.totalorder %s20, 0
      %p234 = por %p232, %p233
      %p235 = scmp.ne.s32.totalorder %s224, %s227
      %p236 = scmp.eq.s32.totalorder %s25, 1
      %p237 = por %p235, %p236
      %p238 = scmp.ne.s32.totalorder %s227, %s228
      %p239 = scmp.eq.s32.totalorder %s25, 0
      %p240 = por %p238, %p239
      %p241 = scmp.ne.s32.totalorder %s227, %s228
      %p242 = scmp.eq.s32.totalorder %s26, 1
      %p243 = por %p241, %p242
      %p245 = scmp.ne.s32.totalorder %s228, %s244
      %p246 = scmp.eq.s32.totalorder %s26, 0
      %p247 = por %p245, %p246
      %p248 = scmp.le.s32.totalorder 1, %s20
      %p249 = scmp.lt.s32.totalorder %s20, 3
      %p250 = pnand %p248, %p249
      %p251 = pneg %p250
      // Predicated region
      $region9: #{tpu_custom_call.1} parent=5 // pred_check
        _
      $region10: #{tpu_custom_call.1} parent=5 // pred_check_branch
        %253 = sbr.rel (%p250) target = $region12
      $region11: #{tpu_custom_call.1} parent=5 // pred_region
        %s254 = ssub.s32 %s20, 1
        // Predicated region
        $region13: #{tpu_custom_call.1} parent=11 // pred_check
          %p255 = pneg %p67
        $region14: #{tpu_custom_call.1} parent=11 // pred_check_branch
          %257 = sbr.rel (%p255) target = $region16
        $region15: #{tpu_custom_call.1} parent=11 // pred_region
          %s259 = ssub.s32 128, 128
          %260 = vsyncadd [#allocation3], %s259
          %s261 = sshll.u32 [#allocation2], 4
          %s262 = int_to_ptr.vmem [resolvable:$true] %s261
          %267 = dma.hbm_to_vmem [thread:$0]  %s1, 128, %s262, [#allocation3], 64, 64, 4
        $region16: #{tpu_custom_call.1} parent=11 // pred_fallthru
          _
        // Predicated region
        $region17: #{tpu_custom_call.1} parent=11 // pred_check
          %p268 = pneg %p88
        $region18: #{tpu_custom_call.1} parent=11 // pred_check_branch
          %270 = sbr.rel (%p268) target = $region20
        $region19: #{tpu_custom_call.1} parent=11 // pred_region
          _
        $region20: #{tpu_custom_call.1} parent=11 // pred_fallthru
          _
        // Predicated region
        $region21: #{tpu_custom_call.1} parent=11 // pred_check
          %p271 = pneg %p109
        $region22: #{tpu_custom_call.1} parent=11 // pred_check_branch
          %273 = sbr.rel (%p271) target = $region24
        $region23: #{tpu_custom_call.1} parent=11 // pred_region
          _
        $region24: #{tpu_custom_call.1} parent=11 // pred_fallthru
          _
        // Predicated region
        $region25: #{tpu_custom_call.1} parent=11 // pred_check
          %p274 = pneg %p130
        $region26: #{tpu_custom_call.1} parent=11 // pred_check_branch
          %276 = sbr.rel (%p274) target = $region28
        $region27: #{tpu_custom_call.1} parent=11 // pred_region
          _
        $region28: #{tpu_custom_call.1} parent=11 // pred_fallthru
          _
        // Predicated region
        $region29: #{tpu_custom_call.1} parent=11 // pred_check
          %p277 = pneg %p151
        $region30: #{tpu_custom_call.1} parent=11 // pred_check_branch
          %279 = sbr.rel (%p277) target = $region32
        $region31: #{tpu_custom_call.1} parent=11 // pred_region
          %s281 = ssub.s32 2048, 2048
          %282 = vsyncadd [#allocation6], %s281
          %s283 = sshll.u32 [#allocation5], 4
          %s284 = int_to_ptr.vmem [resolvable:$true] %s283
          %289 = dma.hbm_to_vmem [thread:$0]  %s5, 2048, %s284, [#allocation6], 128, 128, 8
        $region32: #{tpu_custom_call.1} parent=11 // pred_fallthru
          _
        // Predicated region
        $region33: #{tpu_custom_call.1} parent=11 // pred_check
          %p290 = pneg %p172
        $region34: #{tpu_custom_call.1} parent=11 // pred_check_branch
          %292 = sbr.rel (%p290) target = $region36
        $region35: #{tpu_custom_call.1} parent=11 // pred_region
          %s294 = ssub.s32 16, 16
          %295 = vsyncadd [#allocation6], %s294
          %s297 = sshll.u32 [#allocation7], 4
          %s298 = int_to_ptr.vmem [resolvable:$true] %s297
          %300 = dma.hbm_to_vmem [thread:$0]  %s6, 16, %s298, [#allocation6]
        $region36: #{tpu_custom_call.1} parent=11 // pred_fallthru
          _
        // Predicated region
        $region37: #{tpu_custom_call.1} parent=11 // pred_check
          %p301 = pneg %p193
        $region38: #{tpu_custom_call.1} parent=11 // pred_check_branch
          %303 = sbr.rel (%p301) target = $region40
        $region39: #{tpu_custom_call.1} parent=11 // pred_region
          _
        $region40: #{tpu_custom_call.1} parent=11 // pred_fallthru
          _
        // Predicated region
        $region41: #{tpu_custom_call.1} parent=11 // pred_check
          %p304 = pneg %p214
        $region42: #{tpu_custom_call.1} parent=11 // pred_check_branch
          %306 = sbr.rel (%p304) target = $region44
        $region43: #{tpu_custom_call.1} parent=11 // pred_region
          _
        $region44: #{tpu_custom_call.1} parent=11 // pred_fallthru
          _
      $region12: #{tpu_custom_call.1} parent=5 // pred_fallthru
        _
      %p307 = scmp.lt.s32.totalorder %s20, 2
      // Predicated region
      $region45: #{tpu_custom_call.1} parent=5 // pred_check
        %p308 = pneg %p307
      $region46: #{tpu_custom_call.1} parent=5 // pred_check_branch
        %310 = sbr.rel (%p308) target = $region48
      $region47: #{tpu_custom_call.1} parent=5 // pred_region
        // Predicated region
        $region49: #{tpu_custom_call.1} parent=47 // pred_check
          %p311 = pneg %p40
        $region50: #{tpu_custom_call.1} parent=47 // pred_check_branch
          %313 = sbr.rel (%p311) target = $region52
        $region51: #{tpu_custom_call.1} parent=47 // pred_region
          %s314 = smul.u32 18, %s20
          %p315 = scmp.lt.s32.totalorder %s314, 35
          %s316 = scalar_select %p315, %s314, 35
          %s317 = smul.addr %s316, 4
          %s318 = scalar_lea.vmem %s0, %s317
          %s319 = smul.u32 18, %s20
        $region52: #{tpu_custom_call.1} parent=47 // pred_fallthru
          _
      $region48: #{tpu_custom_call.1} parent=5 // pred_fallthru
        _
      %p320 = scmp.le.s32.totalorder 1, %s20
      %p321 = scmp.lt.s32.totalorder %s20, 3
      %p322 = pnand %p320, %p321
      %p323 = pneg %p322
      // Predicated region
      $region53: #{tpu_custom_call.1} parent=5 // pred_check
        _
      $region54: #{tpu_custom_call.1} parent=5 // pred_check_branch
        %325 = sbr.rel (%p322) target = $region56
      $region55: #{tpu_custom_call.1} parent=5 // pred_region
        %s326 = ssub.s32 %s20, 1
        // Predicated region
        $region57: #{tpu_custom_call.1} parent=55 // pred_check
          %p327 = pneg %p67
        $region58: #{tpu_custom_call.1} parent=55 // pred_check_branch
          %329 = sbr.rel (%p327) target = $region60
        $region59: #{tpu_custom_call.1} parent=55 // pred_region
          %330 = dma.done [#allocation3], 128
        $region60: #{tpu_custom_call.1} parent=55 // pred_fallthru
          _
        // Predicated region
        $region61: #{tpu_custom_call.1} parent=55 // pred_check
          %p331 = pneg %p151
        $region62: #{tpu_custom_call.1} parent=55 // pred_check_branch
          %333 = sbr.rel (%p331) target = $region64
        $region63: #{tpu_custom_call.1} parent=55 // pred_region
          %334 = dma.done [#allocation6], 2048
        $region64: #{tpu_custom_call.1} parent=55 // pred_fallthru
          _
        // Predicated region
        $region65: #{tpu_custom_call.1} parent=55 // pred_check
          %p335 = pneg %p172
        $region66: #{tpu_custom_call.1} parent=55 // pred_check_branch
          %337 = sbr.rel (%p335) target = $region68
        $region67: #{tpu_custom_call.1} parent=55 // pred_region
          %338 = dma.done [#allocation6], 16
        $region68: #{tpu_custom_call.1} parent=55 // pred_fallthru
          _
        %s339 = smul.u32 18, %s25
        %p340 = scmp.lt.s32.totalorder %s339, 35
        %s341 = scalar_select %p340, %s339, 35
        %s342 = smul.addr %s341, 4
        %s343 = scalar_lea.vmem %s0, %s342
        %p344 = pneg %p46
        %p345 = pneg %p43
        %p346 = pneg %p67
        %p347 = pneg %p64
        %p348 = pneg %p88
        %p349 = pneg %p85
        %p350 = pneg %p109
        %p351 = pneg %p106
        %p352 = pneg %p130
        %p353 = pneg %p127
        %p354 = pneg %p151
        %p355 = pneg %p148
        %p356 = pneg %p172
        %p357 = pneg %p169
        %p358 = pneg %p193
        %p359 = pneg %p190
        %p360 = pneg %p214
        %p361 = pneg %p211
        %p362 = pneg %p240
        %p363 = pneg %p237
        %s364 = sand.u32 %s227, 1
        %s365 = scalar_lea.sflag [#allocation4], %s364
        %s366 = sand.u32 %s227, 1
        %s367 = smul.addr %s366, 144
        %s368 = scalar_lea.vmem [#allocation8], %s367
        %s369 = smul.u32 18, %s25
        %p370 = scmp.lt.s32.totalorder %s369, 35
        %s371 = scalar_select %p370, %s369, 35
        %s372 = smul.addr %s371, 4
        %s373 = scalar_lea.vmem %s0, %s372
        %s374 = smul.u32 18, %s25
        %s375 = smul.u32 18, %s25
        %v377 = vld [vmem:[%s8] sm:$0x1]
        %v379 = vlaneseq
        %v380 = vshrl.u32 %v379, 7
        %v381 = vsub.s32 0, %v380
        %v382 = vrot.slane %v377, %v381
        %v384 = vld [vmem:[%s373] sm:$0xf]
        %v385 = vld [vmem:[%s373 + $0x4] sm:$0xf]
        %v386 = vld [vmem:[%s373 + $0x8] sm:$0xf]
        %v387 = vld [vmem:[%s373 + $0xc] sm:$0xf]
        %v388 = vld [vmem:[%s373 + $0x10] sm:$0xf]
        %v389 = vld [vmem:[%s373 + $0x14] sm:$0xf]
        %v390 = vld [vmem:[%s373 + $0x18] sm:$0xf]
        %v391 = vld [vmem:[%s373 + $0x1c] sm:$0xf]
        %v392 = vld [vmem:[%s373 + $0x20] sm:$0xf]
        %v393 = vld [vmem:[%s373 + $0x24] sm:$0xf]
        %v394 = vld [vmem:[%s373 + $0x28] sm:$0xf]
        %v395 = vld [vmem:[%s373 + $0x2c] sm:$0xf]
        %v396 = vld [vmem:[%s373 + $0x30] sm:$0xf]
        %v397 = vld [vmem:[%s373 + $0x34] sm:$0xf]
        %v398 = vld [vmem:[%s373 + $0x38] sm:$0xf]
        %v399 = vld [vmem:[%s373 + $0x3c] sm:$0xf]
        %v400 = vld [vmem:[%s373 + $0x40] sm:$0xf]
        %v401 = vld [vmem:[%s373 + $0x44] sm:$0xf]
        %v402 = vld [vmem:[#allocation2] sm:$0xf]
        %v403 = vld [vmem:[#allocation2 + $0x4] sm:$0xf]
        %v404 = vld [vmem:[%s2] sm:$0x1]
        %v406 = vlaneseq
        %v407 = vshrl.u32 %v406, 7
        %v408 = vsub.s32 0, %v407
        %v409 = vrot.slane %v404, %v408
        %v429 = vunpack.c.l.b16 %v384
        %v430 = vunpack.c.l.b16 %v385
        %v431 = vunpack.c.l.b16 %v386
        %v432 = vunpack.c.l.b16 %v387
        %v433 = vunpack.c.l.b16 %v388
        %v434 = vunpack.c.l.b16 %v389
        %v435 = vunpack.c.l.b16 %v390
        %v436 = vunpack.c.l.b16 %v391
        %v437 = vunpack.c.l.b16 %v392
        %v438 = vunpack.c.l.b16 %v393
        %v439 = vunpack.c.l.b16 %v394
        %v440 = vunpack.c.l.b16 %v395
        %v441 = vunpack.c.l.b16 %v396
        %v442 = vunpack.c.l.b16 %v397
        %v443 = vunpack.c.l.b16 %v398
        %v444 = vunpack.c.l.b16 %v399
        %v445 = vunpack.c.l.b16 %v400
        %v446 = vunpack.c.l.b16 %v401
        %v447 = vpack.c.b16 %v430, %v429
        %v448 = vpack.c.b16 %v432, %v431
        %v449 = vpack.c.b16 %v434, %v433
        %v450 = vpack.c.b16 %v436, %v435
        %v451 = vpack.c.b16 %v438, %v437
        %v452 = vpack.c.b16 %v440, %v439
        %v453 = vpack.c.b16 %v442, %v441
        %v454 = vpack.c.b16 %v444, %v443
        %v455 = vpack.c.b16 %v446, %v445
        %v458 = vunpack.c.l.b16 %v402
        %v459 = vunpack.c.l.b16 %v403
        %v460 = vpack.c.b16 %v459, %v458
        %vm462 = vcmask 130048
        %v464 = vsel %vm462, %v447, 0
        %v467 = vsel %vm462, %v448, 0
        %v470 = vsel %vm462, %v449, 0
        %v473 = vsel %vm462, %v450, 0
        %v476 = vsel %vm462, %v451, 0
        %v479 = vsel %vm462, %v452, 0
        %v482 = vsel %vm462, %v453, 0
        %v485 = vsel %vm462, %v454, 0
        %v488 = vsel %vm462, %v455, 0
        %490 = vmatprep.subr.bf16.mxu0 0
        %491 = vmatpush1.bf16.msra.mxu0 %v460
        %492 = vmatprep.subr.bf16.mxu0 0
        %493 = vmatpush1.bf16.msra.mxu0 0
        %494 = vmatprep.subr.bf16.mxu0 0
        %495 = vmatpush1.bf16.msra.mxu0 0
        %496 = vmatprep.subr.bf16.mxu0 0
        %497 = vmatpush1.bf16.msra.mxu0 0
        %498 = vmatprep.subr.bf16.mxu0 0
        %499 = vmatpush1.bf16.msra.mxu0 0
        %500 = vmatprep.subr.bf16.mxu0 0
        %501 = vmatpush1.bf16.msra.mxu0 0
        %502 = vmatprep.subr.bf16.mxu0 0
        %503 = vmatpush1.bf16.msra.mxu0 0
        %504 = vmatprep.subr.bf16.mxu0 0
        %505 = vmatpush1.bf16.msra.mxu0 0
        %506 = vmatprep.subr.bf16.mxu0 0
        %507 = vmatpush1.bf16.msra.mxu0 0
        %508 = vmatprep.subr.bf16.mxu0 0
        %509 = vmatpush1.bf16.msra.mxu0 0
        %510 = vmatprep.subr.bf16.mxu0 0
        %511 = vmatpush1.bf16.msra.mxu0 0
        %512 = vmatprep.subr.bf16.mxu0 0
        %513 = vmatpush1.bf16.msra.mxu0 0
        %514 = vmatprep.subr.bf16.mxu0 0
        %515 = vmatpush1.bf16.msra.mxu0 0
        %516 = vmatprep.subr.bf16.mxu0 0
        %517 = vmatpush1.bf16.msra.mxu0 0
        %518 = vmatprep.subr.bf16.mxu0 0
        %519 = vmatpush1.bf16.msra.mxu0 0
        %520 = vmatprep.subr.bf16.mxu0 0
        %521 = vmatpush1.bf16.msra.mxu0 0
        %522 = vmatprep.mubr.bf16.mxu0 0
        %523 = vmatmul.mubr.bf16.gmra.mrb[0].mxu0 %v464
        %v524 = vpop.f32.mrb[0].mxu0
        %v525 = vadd.f32 %v409, %v524
        %v526 = vpop.f32.mrb[0].mxu0
        %v527 = vpop.f32.mrb[0].mxu0
        %v528 = vadd.f32 %v409, %v527
        %v529 = vpop.f32.mrb[0].mxu0
        %530 = vmatprep.mubr.bf16.mxu0 0
        %531 = vmatmul.mubr.bf16.gmra.mrb[0].mxu0 %v467
        %v532 = vpop.f32.mrb[0].mxu0
        %v533 = vadd.f32 %v409, %v532
        %v534 = vpop.f32.mrb[0].mxu0
        %v535 = vpop.f32.mrb[0].mxu0
        %v536 = vadd.f32 %v409, %v535
        %v537 = vpop.f32.mrb[0].mxu0
        %538 = vmatprep.mubr.bf16.mxu0 0
        %539 = vmatmul.mubr.bf16.gmra.mrb[0].mxu0 %v470
        %v540 = vpop.f32.mrb[0].mxu0
        %v541 = vadd.f32 %v409, %v540
        %v542 = vpop.f32.mrb[0].mxu0
        %v543 = vpop.f32.mrb[0].mxu0
        %v544 = vadd.f32 %v409, %v543
        %v545 = vpop.f32.mrb[0].mxu0
        %546 = vmatprep.mubr.bf16.mxu0 0
        %547 = vmatmul.mubr.bf16.gmra.mrb[0].mxu0 %v473
        %v548 = vpop.f32.mrb[0].mxu0
        %v549 = vadd.f32 %v409, %v548
        %v550 = vpop.f32.mrb[0].mxu0
        %v551 = vpop.f32.mrb[0].mxu0
        %v552 = vadd.f32 %v409, %v551
        %v553 = vpop.f32.mrb[0].mxu0
        %554 = vmatprep.mubr.bf16.mxu0 0
        %555 = vmatmul.mubr.bf16.gmra.mrb[0].mxu0 %v476
        %v556 = vpop.f32.mrb[0].mxu0
        %v557 = vadd.f32 %v409, %v556
        %v558 = vpop.f32.mrb[0].mxu0
        %v559 = vpop.f32.mrb[0].mxu0
        %v560 = vadd.f32 %v409, %v559
        %v561 = vpop.f32.mrb[0].mxu0
        %562 = vmatprep.mubr.bf16.mxu0 0
        %563 = vmatmul.mubr.bf16.gmra.mrb[0].mxu0 %v479
        %v564 = vpop.f32.mrb[0].mxu0
        %v565 = vadd.f32 %v409, %v564
        %v566 = vpop.f32.mrb[0].mxu0
        %v567 = vpop.f32.mrb[0].mxu0
        %v568 = vadd.f32 %v409, %v567
        %v569 = vpop.f32.mrb[0].mxu0
        %570 = vmatprep.mubr.bf16.mxu0 0
        %571 = vmatmul.mubr.bf16.gmra.mrb[0].mxu0 %v482
        %v572 = vpop.f32.mrb[0].mxu0
        %v573 = vadd.f32 %v409, %v572
        %v574 = vpop.f32.mrb[0].mxu0
        %v575 = vpop.f32.mrb[0].mxu0
        %v576 = vadd.f32 %v409, %v575
        %v577 = vpop.f32.mrb[0].mxu0
        %578 = vmatprep.mubr.bf16.mxu0 0
        %579 = vmatmul.mubr.bf16.gmra.mrb[0].mxu0 %v485
        %v580 = vpop.f32.mrb[0].mxu0
        %v581 = vadd.f32 %v409, %v580
        %v582 = vpop.f32.mrb[0].mxu0
        %v583 = vpop.f32.mrb[0].mxu0
        %v584 = vadd.f32 %v409, %v583
        %v585 = vpop.f32.mrb[0].mxu0
        %586 = vmatprep.mubr.bf16.mxu0 0
        %587 = vmatmul.mubr.bf16.gmra.mrb[0].mxu0 %v488
        %v588 = vpop.f32.mrb[0].mxu0
        %v589 = vadd.f32 %v409, %v588
        %v590 = vpop.f32.mrb[0].mxu0
        %v591 = vpop.f32.mrb[0].mxu0
        %v592 = vadd.f32 %v409, %v591
        %v593 = vpop.f32.mrb[0].mxu0
        %594 = vdwg.mxu0
        %v595 = vmax.f32 %v525, 0.0
        %v596 = vmax.f32 %v528, 0.0
        %v597 = vmax.f32 %v533, 0.0
        %v598 = vmax.f32 %v536, 0.0
        %v599 = vmax.f32 %v541, 0.0
        %v600 = vmax.f32 %v544, 0.0
        %v601 = vmax.f32 %v549, 0.0
        %v602 = vmax.f32 %v552, 0.0
        %v603 = vmax.f32 %v557, 0.0
        %v604 = vmax.f32 %v560, 0.0
        %v605 = vmax.f32 %v565, 0.0
        %v606 = vmax.f32 %v568, 0.0
        %v607 = vmax.f32 %v573, 0.0
        %v608 = vmax.f32 %v576, 0.0
        %v609 = vmax.f32 %v581, 0.0
        %v610 = vmax.f32 %v584, 0.0
        %v611 = vmax.f32 %v589, 0.0
        %v612 = vmax.f32 %v592, 0.0
        %v613 = vpack.c.bf16 %v596, %v595
        %v614 = vpack.c.bf16 %v598, %v597
        %v615 = vpack.c.bf16 %v600, %v599
        %v616 = vpack.c.bf16 %v602, %v601
        %v617 = vpack.c.bf16 %v604, %v603
        %v618 = vpack.c.bf16 %v606, %v605
        %v619 = vpack.c.bf16 %v608, %v607
        %v620 = vpack.c.bf16 %v610, %v609
        %v621 = vpack.c.bf16 %v612, %v611
        %v622 = vld [vmem:[%s3] sm:$0xff]
        %v623 = vld [vmem:[%s3 + $0x8] sm:$0xff]
        %v624 = vld [vmem:[%s3 + $0x10] sm:$0xff]
        %v625 = vld [vmem:[%s3 + $0x18] sm:$0xff]
        %v626 = vld [vmem:[%s3 + $0x20] sm:$0xff]
        %v627 = vld [vmem:[%s3 + $0x28] sm:$0xff]
        %v628 = vld [vmem:[%s3 + $0x30] sm:$0xff]
        %v629 = vld [vmem:[%s3 + $0x38] sm:$0xff]
        %v630 = vld [vmem:[%s3 + $0x40] sm:$0xff]
        %v631 = vld [vmem:[%s3 + $0x48] sm:$0xff]
        %v632 = vld [vmem:[%s3 + $0x50] sm:$0xff]
        %v633 = vld [vmem:[%s3 + $0x58] sm:$0xff]
        %v634 = vld [vmem:[%s3 + $0x60] sm:$0xff]
        %v635 = vld [vmem:[%s3 + $0x68] sm:$0xff]
        %v636 = vld [vmem:[%s3 + $0x70] sm:$0xff]
        %v637 = vld [vmem:[%s3 + $0x78] sm:$0xff]
        %v654 = vunpack.c.l.b16 %v622
        %v655 = vunpack.c.h.b16 %v622
        %v656 = vunpack.c.l.b16 %v623
        %v657 = vunpack.c.h.b16 %v623
        %v658 = vunpack.c.l.b16 %v624
        %v659 = vunpack.c.h.b16 %v624
        %v660 = vunpack.c.l.b16 %v625
        %v661 = vunpack.c.h.b16 %v625
        %v662 = vunpack.c.l.b16 %v626
        %v663 = vunpack.c.h.b16 %v626
        %v664 = vunpack.c.l.b16 %v627
        %v665 = vunpack.c.h.b16 %v627
        %v666 = vunpack.c.l.b16 %v628
        %v667 = vunpack.c.h.b16 %v628
        %v668 = vunpack.c.l.b16 %v629
        %v669 = vunpack.c.h.b16 %v629
        %v670 = vunpack.c.l.b16 %v630
        %v671 = vunpack.c.h.b16 %v630
        %v672 = vunpack.c.l.b16 %v631
        %v673 = vunpack.c.h.b16 %v631
        %v674 = vunpack.c.l.b16 %v632
        %v675 = vunpack.c.h.b16 %v632
        %v676 = vunpack.c.l.b16 %v633
        %v677 = vunpack.c.h.b16 %v633
        %v678 = vunpack.c.l.b16 %v634
        %v679 = vunpack.c.h.b16 %v634
        %v680 = vunpack.c.l.b16 %v635
        %v681 = vunpack.c.h.b16 %v635
        %v682 = vunpack.c.l.b16 %v636
        %v683 = vunpack.c.h.b16 %v636
        %v684 = vunpack.c.l.b16 %v637
        %v685 = vunpack.c.h.b16 %v637
        %v686 = vpack.c.b16 %v656, %v654
        %v687 = vpack.c.b16 %v657, %v655
        %v688 = vpack.c.b16 %v660, %v658
        %v689 = vpack.c.b16 %v661, %v659
        %v690 = vpack.c.b16 %v664, %v662
        %v691 = vpack.c.b16 %v665, %v663
        %v692 = vpack.c.b16 %v668, %v666
        %v693 = vpack.c.b16 %v669, %v667
        %v694 = vpack.c.b16 %v672, %v670
        %v695 = vpack.c.b16 %v673, %v671
        %v696 = vpack.c.b16 %v676, %v674
        %v697 = vpack.c.b16 %v677, %v675
        %v698 = vpack.c.b16 %v680, %v678
        %v699 = vpack.c.b16 %v681, %v679
        %v700 = vpack.c.b16 %v684, %v682
        %v701 = vpack.c.b16 %v685, %v683
        %718 = vmatprep.subr.bf16.mxu0 %v687
        %719 = vmatpush1.bf16.msra.mxu0 %v686
        %720 = vmatprep.subr.bf16.mxu0 %v689
        %721 = vmatpush1.bf16.msra.mxu0 %v688
        %722 = vmatprep.subr.bf16.mxu0 %v691
        %723 = vmatpush1.bf16.msra.mxu0 %v690
        %724 = vmatprep.subr.bf16.mxu0 %v693
        %725 = vmatpush1.bf16.msra.mxu0 %v692
        %726 = vmatprep.subr.bf16.mxu0 %v695
        %727 = vmatpush1.bf16.msra.mxu0 %v694
        %728 = vmatprep.subr.bf16.mxu0 %v697
        %729 = vmatpush1.bf16.msra.mxu0 %v696
        %730 = vmatprep.subr.bf16.mxu0 %v699
        %731 = vmatpush1.bf16.msra.mxu0 %v698
        %732 = vmatprep.subr.bf16.mxu0 %v701
        %733 = vmatpush1.bf16.msra.mxu0 %v700
        %734 = vmatprep.subr.bf16.mxu0 0
        %735 = vmatpush1.bf16.msra.mxu0 0
        %736 = vmatprep.subr.bf16.mxu0 0
        %737 = vmatpush1.bf16.msra.mxu0 0
        %738 = vmatprep.subr.bf16.mxu0 0
        %739 = vmatpush1.bf16.msra.mxu0 0
        %740 = vmatprep.subr.bf16.mxu0 0
        %741 = vmatpush1.bf16.msra.mxu0 0
        %742 = vmatprep.subr.bf16.mxu0 0
        %743 = vmatpush1.bf16.msra.mxu0 0
        %744 = vmatprep.subr.bf16.mxu0 0
        %745 = vmatpush1.bf16.msra.mxu0 0
        %746 = vmatprep.subr.bf16.mxu0 0
        %747 = vmatpush1.bf16.msra.mxu0 0
        %748 = vmatprep.subr.bf16.mxu0 0
        %749 = vmatpush1.bf16.msra.mxu0 0
        %750 = vmatprep.mubr.bf16.mxu0 0
        %751 = vmatmul.mubr.bf16.gmra.mrb[0].mxu0 %v613
        %v752 = vpop.f32.mrb[0].mxu0
        %v753 = vadd.f32 0.0, %v752
        %v754 = vpop.f32.mrb[0].mxu0
        %v755 = vadd.f32 0.0, %v754
        %v756 = vpop.f32.mrb[0].mxu0
        %v757 = vadd.f32 0.0, %v756
        %v758 = vpop.f32.mrb[0].mxu0
        %v759 = vadd.f32 0.0, %v758
        %760 = vmatprep.mubr.bf16.mxu0 0
        %761 = vmatmul.mubr.bf16.gmra.mrb[0].mxu0 %v614
        %v762 = vpop.f32.mrb[0].mxu0
        %v763 = vadd.f32 0.0, %v762
        %v764 = vpop.f32.mrb[0].mxu0
        %v765 = vadd.f32 0.0, %v764
        %v766 = vpop.f32.mrb[0].mxu0
        %v767 = vadd.f32 0.0, %v766
        %v768 = vpop.f32.mrb[0].mxu0
        %v769 = vadd.f32 0.0, %v768
        %770 = vmatprep.mubr.bf16.mxu0 0
        %771 = vmatmul.mubr.bf16.gmra.mrb[0].mxu0 %v615
        %v772 = vpop.f32.mrb[0].mxu0
        %v773 = vadd.f32 0.0, %v772
        %v774 = vpop.f32.mrb[0].mxu0
        %v775 = vadd.f32 0.0, %v774
        %v776 = vpop.f32.mrb[0].mxu0
        %v777 = vadd.f32 0.0, %v776
        %v778 = vpop.f32.mrb[0].mxu0
        %v779 = vadd.f32 0.0, %v778
        %780 = vmatprep.mubr.bf16.mxu0 0
        %781 = vmatmul.mubr.bf16.gmra.mrb[0].mxu0 %v616
        %v782 = vpop.f32.mrb[0].mxu0
        %v783 = vadd.f32 0.0, %v782
        %v784 = vpop.f32.mrb[0].mxu0
        %v785 = vadd.f32 0.0, %v784
        %v786 = vpop.f32.mrb[0].mxu0
        %v787 = vadd.f32 0.0, %v786
        %v788 = vpop.f32.mrb[0].mxu0
        %v789 = vadd.f32 0.0, %v788
        %790 = vmatprep.mubr.bf16.mxu0 0
        %791 = vmatmul.mubr.bf16.gmra.mrb[0].mxu0 %v617
        %v792 = vpop.f32.mrb[0].mxu0
        %v793 = vadd.f32 0.0, %v792
        %v794 = vpop.f32.mrb[0].mxu0
        %v795 = vadd.f32 0.0, %v794
        %v796 = vpop.f32.mrb[0].mxu0
        %v797 = vadd.f32 0.0, %v796
        %v798 = vpop.f32.mrb[0].mxu0
        %v799 = vadd.f32 0.0, %v798
        %800 = vmatprep.mubr.bf16.mxu0 0
        %801 = vmatmul.mubr.bf16.gmra.mrb[0].mxu0 %v618
        %v802 = vpop.f32.mrb[0].mxu0
        %v803 = vadd.f32 0.0, %v802
        %v804 = vpop.f32.mrb[0].mxu0
        %v805 = vadd.f32 0.0, %v804
        %v806 = vpop.f32.mrb[0].mxu0
        %v807 = vadd.f32 0.0, %v806
        %v808 = vpop.f32.mrb[0].mxu0
        %v809 = vadd.f32 0.0, %v808
        %810 = vmatprep.mubr.bf16.mxu0 0
        %811 = vmatmul.mubr.bf16.gmra.mrb[0].mxu0 %v619
        %v812 = vpop.f32.mrb[0].mxu0
        %v813 = vadd.f32 0.0, %v812
        %v814 = vpop.f32.mrb[0].mxu0
        %v815 = vadd.f32 0.0, %v814
        %v816 = vpop.f32.mrb[0].mxu0
        %v817 = vadd.f32 0.0, %v816
        %v818 = vpop.f32.mrb[0].mxu0
        %v819 = vadd.f32 0.0, %v818
        %820 = vmatprep.mubr.bf16.mxu0 0
        %821 = vmatmul.mubr.bf16.gmra.mrb[0].mxu0 %v620
        %v822 = vpop.f32.mrb[0].mxu0
        %v823 = vadd.f32 0.0, %v822
        %v824 = vpop.f32.mrb[0].mxu0
        %v825 = vadd.f32 0.0, %v824
        %v826 = vpop.f32.mrb[0].mxu0
        %v827 = vadd.f32 0.0, %v826
        %v828 = vpop.f32.mrb[0].mxu0
        %v829 = vadd.f32 0.0, %v828
        %830 = vmatprep.mubr.bf16.mxu0 0
        %831 = vmatmul.mubr.bf16.gmra.mrb[0].mxu0 %v621
        %v832 = vpop.f32.mrb[0].mxu0
        %v833 = vadd.f32 0.0, %v832
        %v834 = vpop.f32.mrb[0].mxu0
        %v835 = vadd.f32 0.0, %v834
        %v836 = vpop.f32.mrb[0].mxu0
        %v837 = vadd.f32 0.0, %v836
        %v838 = vpop.f32.mrb[0].mxu0
        %v839 = vadd.f32 0.0, %v838
        %840 = vdwg.mxu0
        %v841 = vadd.f32 %v382, %v755
        %v842 = vadd.f32 %v382, %v759
        %v843 = vadd.f32 %v382, %v765
        %v844 = vadd.f32 %v382, %v769
        %v845 = vadd.f32 %v382, %v775
        %v846 = vadd.f32 %v382, %v779
        %v847 = vadd.f32 %v382, %v785
        %v848 = vadd.f32 %v382, %v789
        %v849 = vadd.f32 %v382, %v795
        %v850 = vadd.f32 %v382, %v799
        %v851 = vadd.f32 %v382, %v805
        %v852 = vadd.f32 %v382, %v809
        %v853 = vadd.f32 %v382, %v815
        %v854 = vadd.f32 %v382, %v819
        %v855 = vadd.f32 %v382, %v825
        %v856 = vadd.f32 %v382, %v829
        %v857 = vadd.f32 %v382, %v835
        %v858 = vadd.f32 %v382, %v839
        %v859 = vld [vmem:[%s4] sm:$0x1]
        %v861 = vlaneseq
        %v862 = vshrl.u32 %v861, 7
        %v863 = vsub.s32 0, %v862
        %v864 = vrot.slane %v859, %v863
        %v866 = vadd.f32 %v753, %v864
        %v867 = vadd.f32 %v757, %v864
        %v868 = vadd.f32 %v763, %v864
        %v869 = vadd.f32 %v767, %v864
        %v870 = vadd.f32 %v773, %v864
        %v871 = vadd.f32 %v777, %v864
        %v872 = vadd.f32 %v783, %v864
        %v873 = vadd.f32 %v787, %v864
        %v874 = vadd.f32 %v793, %v864
        %v875 = vadd.f32 %v797, %v864
        %v876 = vadd.f32 %v803, %v864
        %v877 = vadd.f32 %v807, %v864
        %v878 = vadd.f32 %v813, %v864
        %v879 = vadd.f32 %v817, %v864
        %v880 = vadd.f32 %v823, %v864
        %v881 = vadd.f32 %v827, %v864
        %v882 = vadd.f32 %v833, %v864
        %v883 = vadd.f32 %v837, %v864
        %v884 = vmax.f32 %v866, 0.0
        %v885 = vmax.f32 %v867, 0.0
        %v886 = vmax.f32 %v868, 0.0
        %v887 = vmax.f32 %v869, 0.0
        %v888 = vmax.f32 %v870, 0.0
        %v889 = vmax.f32 %v871, 0.0
        %v890 = vmax.f32 %v872, 0.0
        %v891 = vmax.f32 %v873, 0.0
        %v892 = vmax.f32 %v874, 0.0
        %v893 = vmax.f32 %v875, 0.0
        %v894 = vmax.f32 %v876, 0.0
        %v895 = vmax.f32 %v877, 0.0
        %v896 = vmax.f32 %v878, 0.0
        %v897 = vmax.f32 %v879, 0.0
        %v898 = vmax.f32 %v880, 0.0
        %v899 = vmax.f32 %v881, 0.0
        %v900 = vmax.f32 %v882, 0.0
        %v901 = vmax.f32 %v883, 0.0
        %v902 = vpack.c.bf16 %v885, %v884
        %v903 = vpack.c.bf16 %v887, %v886
        %v904 = vpack.c.bf16 %v889, %v888
        %v905 = vpack.c.bf16 %v891, %v890
        %v906 = vpack.c.bf16 %v893, %v892
        %v907 = vpack.c.bf16 %v895, %v894
        %v908 = vpack.c.bf16 %v897, %v896
        %v909 = vpack.c.bf16 %v899, %v898
        %v910 = vpack.c.bf16 %v901, %v900
        %v911 = vld [vmem:[#allocation5] sm:$0xff]
        %v912 = vld [vmem:[#allocation5 + $0x8] sm:$0xff]
        %v913 = vld [vmem:[#allocation5 + $0x10] sm:$0xff]
        %v914 = vld [vmem:[#allocation5 + $0x18] sm:$0xff]
        %v915 = vld [vmem:[#allocation5 + $0x20] sm:$0xff]
        %v916 = vld [vmem:[#allocation5 + $0x28] sm:$0xff]
        %v917 = vld [vmem:[#allocation5 + $0x30] sm:$0xff]
        %v918 = vld [vmem:[#allocation5 + $0x38] sm:$0xff]
        %v919 = vld [vmem:[#allocation5 + $0x40] sm:$0xff]
        %v920 = vld [vmem:[#allocation5 + $0x48] sm:$0xff]
        %v921 = vld [vmem:[#allocation5 + $0x50] sm:$0xff]
        %v922 = vld [vmem:[#allocation5 + $0x58] sm:$0xff]
        %v923 = vld [vmem:[#allocation5 + $0x60] sm:$0xff]
        %v924 = vld [vmem:[#allocation5 + $0x68] sm:$0xff]
        %v925 = vld [vmem:[#allocation5 + $0x70] sm:$0xff]
        %v926 = vld [vmem:[#allocation5 + $0x78] sm:$0xff]
        %v943 = vunpack.c.l.b16 %v911
        %v944 = vunpack.c.h.b16 %v911
        %v945 = vunpack.c.l.b16 %v912
        %v946 = vunpack.c.h.b16 %v912
        %v947 = vunpack.c.l.b16 %v913
        %v948 = vunpack.c.h.b16 %v913
        %v949 = vunpack.c.l.b16 %v914
        %v950 = vunpack.c.h.b16 %v914
        %v951 = vunpack.c.l.b16 %v915
        %v952 = vunpack.c.h.b16 %v915
        %v953 = vunpack.c.l.b16 %v916
        %v954 = vunpack.c.h.b16 %v916
        %v955 = vunpack.c.l.b16 %v917
        %v956 = vunpack.c.h.b16 %v917
        %v957 = vunpack.c.l.b16 %v918
        %v958 = vunpack.c.h.b16 %v918
        %v959 = vunpack.c.l.b16 %v919
        %v960 = vunpack.c.h.b16 %v919
        %v961 = vunpack.c.l.b16 %v920
        %v962 = vunpack.c.h.b16 %v920
        %v963 = vunpack.c.l.b16 %v921
        %v964 = vunpack.c.h.b16 %v921
        %v965 = vunpack.c.l.b16 %v922
        %v966 = vunpack.c.h.b16 %v922
        %v967 = vunpack.c.l.b16 %v923
        %v968 = vunpack.c.h.b16 %v923
        %v969 = vunpack.c.l.b16 %v924
        %v970 = vunpack.c.h.b16 %v924
        %v971 = vunpack.c.l.b16 %v925
        %v972 = vunpack.c.h.b16 %v925
        %v973 = vunpack.c.l.b16 %v926
        %v974 = vunpack.c.h.b16 %v926
        %v975 = vpack.c.b16 %v945, %v943
        %v976 = vpack.c.b16 %v946, %v944
        %v977 = vpack.c.b16 %v949, %v947
        %v978 = vpack.c.b16 %v950, %v948
        %v979 = vpack.c.b16 %v953, %v951
        %v980 = vpack.c.b16 %v954, %v952
        %v981 = vpack.c.b16 %v957, %v955
        %v982 = vpack.c.b16 %v958, %v956
        %v983 = vpack.c.b16 %v961, %v959
        %v984 = vpack.c.b16 %v962, %v960
        %v985 = vpack.c.b16 %v965, %v963
        %v986 = vpack.c.b16 %v966, %v964
        %v987 = vpack.c.b16 %v969, %v967
        %v988 = vpack.c.b16 %v970, %v968
        %v989 = vpack.c.b16 %v973, %v971
        %v990 = vpack.c.b16 %v974, %v972
        %1007 = vmatprep.subr.bf16.mxu0 %v976
        %1008 = vmatpush1.bf16.msra.mxu0 %v975
        %1009 = vmatprep.subr.bf16.mxu0 %v978
        %1010 = vmatpush1.bf16.msra.mxu0 %v977
        %1011 = vmatprep.subr.bf16.mxu0 %v980
        %1012 = vmatpush1.bf16.msra.mxu0 %v979
        %1013 = vmatprep.subr.bf16.mxu0 %v982
        %1014 = vmatpush1.bf16.msra.mxu0 %v981
        %1015 = vmatprep.subr.bf16.mxu0 %v984
        %1016 = vmatpush1.bf16.msra.mxu0 %v983
        %1017 = vmatprep.subr.bf16.mxu0 %v986
        %1018 = vmatpush1.bf16.msra.mxu0 %v985
        %1019 = vmatprep.subr.bf16.mxu0 %v988
        %1020 = vmatpush1.bf16.msra.mxu0 %v987
        %1021 = vmatprep.subr.bf16.mxu0 %v990
        %1022 = vmatpush1.bf16.msra.mxu0 %v989
        %1023 = vmatprep.subr.bf16.mxu0 0
        %1024 = vmatpush1.bf16.msra.mxu0 0
        %1025 = vmatprep.subr.bf16.mxu0 0
        %1026 = vmatpush1.bf16.msra.mxu0 0
        %1027 = vmatprep.subr.bf16.mxu0 0
        %1028 = vmatpush1.bf16.msra.mxu0 0
        %1029 = vmatprep.subr.bf16.mxu0 0
        %1030 = vmatpush1.bf16.msra.mxu0 0
        %1031 = vmatprep.subr.bf16.mxu0 0
        %1032 = vmatpush1.bf16.msra.mxu0 0
        %1033 = vmatprep.subr.bf16.mxu0 0
        %1034 = vmatpush1.bf16.msra.mxu0 0
        %1035 = vmatprep.subr.bf16.mxu0 0
        %1036 = vmatpush1.bf16.msra.mxu0 0
        %1037 = vmatprep.subr.bf16.mxu0 0
        %1038 = vmatpush1.bf16.msra.mxu0 0
        %1039 = vmatprep.mubr.bf16.mxu0 0
        %1040 = vmatmul.mubr.bf16.gmra.mrb[0].mxu0 %v902
        %v1041 = vpop.f32.mrb[0].mxu0
        %v1042 = vadd.f32 0.0, %v1041
        %v1043 = vpop.f32.mrb[0].mxu0
        %v1044 = vadd.f32 0.0, %v1043
        %v1045 = vpop.f32.mrb[0].mxu0
        %v1046 = vadd.f32 0.0, %v1045
        %v1047 = vpop.f32.mrb[0].mxu0
        %v1048 = vadd.f32 0.0, %v1047
        %1049 = vmatprep.mubr.bf16.mxu0 0
        %1050 = vmatmul.mubr.bf16.gmra.mrb[0].mxu0 %v903
        %v1051 = vpop.f32.mrb[0].mxu0
        %v1052 = vadd.f32 0.0, %v1051
        %v1053 = vpop.f32.mrb[0].mxu0
        %v1054 = vadd.f32 0.0, %v1053
        %v1055 = vpop.f32.mrb[0].mxu0
        %v1056 = vadd.f32 0.0, %v1055
        %v1057 = vpop.f32.mrb[0].mxu0
        %v1058 = vadd.f32 0.0, %v1057
        %1059 = vmatprep.mubr.bf16.mxu0 0
        %1060 = vmatmul.mubr.bf16.gmra.mrb[0].mxu0 %v904
        %v1061 = vpop.f32.mrb[0].mxu0
        %v1062 = vadd.f32 0.0, %v1061
        %v1063 = vpop.f32.mrb[0].mxu0
        %v1064 = vadd.f32 0.0, %v1063
        %v1065 = vpop.f32.mrb[0].mxu0
        %v1066 = vadd.f32 0.0, %v1065
        %v1067 = vpop.f32.mrb[0].mxu0
        %v1068 = vadd.f32 0.0, %v1067
        %1069 = vmatprep.mubr.bf16.mxu0 0
        %1070 = vmatmul.mubr.bf16.gmra.mrb[0].mxu0 %v905
        %v1071 = vpop.f32.mrb[0].mxu0
        %v1072 = vadd.f32 0.0, %v1071
        %v1073 = vpop.f32.mrb[0].mxu0
        %v1074 = vadd.f32 0.0, %v1073
        %v1075 = vpop.f32.mrb[0].mxu0
        %v1076 = vadd.f32 0.0, %v1075
        %v1077 = vpop.f32.mrb[0].mxu0
        %v1078 = vadd.f32 0.0, %v1077
        %1079 = vmatprep.mubr.bf16.mxu0 0
        %1080 = vmatmul.mubr.bf16.gmra.mrb[0].mxu0 %v906
        %v1081 = vpop.f32.mrb[0].mxu0
        %v1082 = vadd.f32 0.0, %v1081
        %v1083 = vpop.f32.mrb[0].mxu0
        %v1084 = vadd.f32 0.0, %v1083
        %v1085 = vpop.f32.mrb[0].mxu0
        %v1086 = vadd.f32 0.0, %v1085
        %v1087 = vpop.f32.mrb[0].mxu0
        %v1088 = vadd.f32 0.0, %v1087
        %1089 = vmatprep.mubr.bf16.mxu0 0
        %1090 = vmatmul.mubr.bf16.gmra.mrb[0].mxu0 %v907
        %v1091 = vpop.f32.mrb[0].mxu0
        %v1092 = vadd.f32 0.0, %v1091
        %v1093 = vpop.f32.mrb[0].mxu0
        %v1094 = vadd.f32 0.0, %v1093
        %v1095 = vpop.f32.mrb[0].mxu0
        %v1096 = vadd.f32 0.0, %v1095
        %v1097 = vpop.f32.mrb[0].mxu0
        %v1098 = vadd.f32 0.0, %v1097
        %1099 = vmatprep.mubr.bf16.mxu0 0
        %1100 = vmatmul.mubr.bf16.gmra.mrb[0].mxu0 %v908
        %v1101 = vpop.f32.mrb[0].mxu0
        %v1102 = vadd.f32 0.0, %v1101
        %v1103 = vpop.f32.mrb[0].mxu0
        %v1104 = vadd.f32 0.0, %v1103
        %v1105 = vpop.f32.mrb[0].mxu0
        %v1106 = vadd.f32 0.0, %v1105
        %v1107 = vpop.f32.mrb[0].mxu0
        %v1108 = vadd.f32 0.0, %v1107
        %1109 = vmatprep.mubr.bf16.mxu0 0
        %1110 = vmatmul.mubr.bf16.gmra.mrb[0].mxu0 %v909
        %v1111 = vpop.f32.mrb[0].mxu0
        %v1112 = vadd.f32 0.0, %v1111
        %v1113 = vpop.f32.mrb[0].mxu0
        %v1114 = vadd.f32 0.0, %v1113
        %v1115 = vpop.f32.mrb[0].mxu0
        %v1116 = vadd.f32 0.0, %v1115
        %v1117 = vpop.f32.mrb[0].mxu0
        %v1118 = vadd.f32 0.0, %v1117
        %1119 = vmatprep.mubr.bf16.mxu0 0
        %1120 = vmatmul.mubr.bf16.gmra.mrb[0].mxu0 %v910
        %v1121 = vpop.f32.mrb[0].mxu0
        %v1122 = vadd.f32 0.0, %v1121
        %v1123 = vpop.f32.mrb[0].mxu0
        %v1124 = vadd.f32 0.0, %v1123
        %v1125 = vpop.f32.mrb[0].mxu0
        %v1126 = vadd.f32 0.0, %v1125
        %v1127 = vpop.f32.mrb[0].mxu0
        %v1128 = vadd.f32 0.0, %v1127
        %1129 = vdwg.mxu0
        %v1130 = vadd.f32 %v841, %v1044
        %v1131 = vadd.f32 %v842, %v1048
        %v1132 = vadd.f32 %v843, %v1054
        %v1133 = vadd.f32 %v844, %v1058
        %v1134 = vadd.f32 %v845, %v1064
        %v1135 = vadd.f32 %v846, %v1068
        %v1136 = vadd.f32 %v847, %v1074
        %v1137 = vadd.f32 %v848, %v1078
        %v1138 = vadd.f32 %v849, %v1084
        %v1139 = vadd.f32 %v850, %v1088
        %v1140 = vadd.f32 %v851, %v1094
        %v1141 = vadd.f32 %v852, %v1098
        %v1142 = vadd.f32 %v853, %v1104
        %v1143 = vadd.f32 %v854, %v1108
        %v1144 = vadd.f32 %v855, %v1114
        %v1145 = vadd.f32 %v856, %v1118
        %v1146 = vadd.f32 %v857, %v1124
        %v1147 = vadd.f32 %v858, %v1128
        %v1148 = vld [vmem:[#allocation7] sm:$0x1]
        %v1150 = vlaneseq
        %v1151 = vshrl.u32 %v1150, 7
        %v1152 = vsub.s32 0, %v1151
        %v1153 = vrot.slane %v1148, %v1152
        %v1155 = vadd.f32 %v1042, %v1153
        %v1156 = vadd.f32 %v1046, %v1153
        %v1157 = vadd.f32 %v1052, %v1153
        %v1158 = vadd.f32 %v1056, %v1153
        %v1159 = vadd.f32 %v1062, %v1153
        %v1160 = vadd.f32 %v1066, %v1153
        %v1161 = vadd.f32 %v1072, %v1153
        %v1162 = vadd.f32 %v1076, %v1153
        %v1163 = vadd.f32 %v1082, %v1153
        %v1164 = vadd.f32 %v1086, %v1153
        %v1165 = vadd.f32 %v1092, %v1153
        %v1166 = vadd.f32 %v1096, %v1153
        %v1167 = vadd.f32 %v1102, %v1153
        %v1168 = vadd.f32 %v1106, %v1153
        %v1169 = vadd.f32 %v1112, %v1153
        %v1170 = vadd.f32 %v1116, %v1153
        %v1171 = vadd.f32 %v1122, %v1153
        %v1172 = vadd.f32 %v1126, %v1153
        %v1173 = vmax.f32 %v1155, 0.0
        %v1174 = vmax.f32 %v1156, 0.0
        %v1175 = vmax.f32 %v1157, 0.0
        %v1176 = vmax.f32 %v1158, 0.0
        %v1177 = vmax.f32 %v1159, 0.0
        %v1178 = vmax.f32 %v1160, 0.0
        %v1179 = vmax.f32 %v1161, 0.0
        %v1180 = vmax.f32 %v1162, 0.0
        %v1181 = vmax.f32 %v1163, 0.0
        %v1182 = vmax.f32 %v1164, 0.0
        %v1183 = vmax.f32 %v1165, 0.0
        %v1184 = vmax.f32 %v1166, 0.0
        %v1185 = vmax.f32 %v1167, 0.0
        %v1186 = vmax.f32 %v1168, 0.0
        %v1187 = vmax.f32 %v1169, 0.0
        %v1188 = vmax.f32 %v1170, 0.0
        %v1189 = vmax.f32 %v1171, 0.0
        %v1190 = vmax.f32 %v1172, 0.0
        %v1191 = vpack.c.bf16 %v1174, %v1173
        %v1192 = vpack.c.bf16 %v1176, %v1175
        %v1193 = vpack.c.bf16 %v1178, %v1177
        %v1194 = vpack.c.bf16 %v1180, %v1179
        %v1195 = vpack.c.bf16 %v1182, %v1181
        %v1196 = vpack.c.bf16 %v1184, %v1183
        %v1197 = vpack.c.bf16 %v1186, %v1185
        %v1198 = vpack.c.bf16 %v1188, %v1187
        %v1199 = vpack.c.bf16 %v1190, %v1189
        %v1200 = vld [vmem:[%s7] sm:$0xf]
        %v1201 = vld [vmem:[%s7 + $0x4] sm:$0xf]
        %v1202 = vld [vmem:[%s7 + $0x8] sm:$0xf]
        %v1203 = vld [vmem:[%s7 + $0xc] sm:$0xf]
        %v1204 = vld [vmem:[%s7 + $0x10] sm:$0xf]
        %v1205 = vld [vmem:[%s7 + $0x14] sm:$0xf]
        %v1206 = vld [vmem:[%s7 + $0x18] sm:$0xf]
        %v1207 = vld [vmem:[%s7 + $0x1c] sm:$0xf]
        %v1208 = vld [vmem:[%s7 + $0x20] sm:$0xf]
        %v1209 = vld [vmem:[%s7 + $0x24] sm:$0xf]
        %v1210 = vld [vmem:[%s7 + $0x28] sm:$0xf]
        %v1211 = vld [vmem:[%s7 + $0x2c] sm:$0xf]
        %v1212 = vld [vmem:[%s7 + $0x30] sm:$0xf]
        %v1213 = vld [vmem:[%s7 + $0x34] sm:$0xf]
        %v1214 = vld [vmem:[%s7 + $0x38] sm:$0xf]
        %v1215 = vld [vmem:[%s7 + $0x3c] sm:$0xf]
        %v1232 = vunpack.c.l.b16 %v1200
        %v1233 = vunpack.c.l.b16 %v1201
        %v1234 = vunpack.c.l.b16 %v1202
        %v1235 = vunpack.c.l.b16 %v1203
        %v1236 = vunpack.c.l.b16 %v1204
        %v1237 = vunpack.c.l.b16 %v1205
        %v1238 = vunpack.c.l.b16 %v1206
        %v1239 = vunpack.c.l.b16 %v1207
        %v1240 = vunpack.c.l.b16 %v1208
        %v1241 = vunpack.c.l.b16 %v1209
        %v1242 = vunpack.c.l.b16 %v1210
        %v1243 = vunpack.c.l.b16 %v1211
        %v1244 = vunpack.c.l.b16 %v1212
        %v1245 = vunpack.c.l.b16 %v1213
        %v1246 = vunpack.c.l.b16 %v1214
        %v1247 = vunpack.c.l.b16 %v1215
        %v1248 = vpack.c.b16 %v1233, %v1232
        %v1249 = vpack.c.b16 %v1235, %v1234
        %v1250 = vpack.c.b16 %v1237, %v1236
        %v1251 = vpack.c.b16 %v1239, %v1238
        %v1252 = vpack.c.b16 %v1241, %v1240
        %v1253 = vpack.c.b16 %v1243, %v1242
        %v1254 = vpack.c.b16 %v1245, %v1244
        %v1255 = vpack.c.b16 %v1247, %v1246
        %1264 = vmatprep.subr.bf16.mxu0 0
        %1265 = vmatpush1.bf16.msra.mxu0 %v1248
        %1266 = vmatprep.subr.bf16.mxu0 0
        %1267 = vmatpush1.bf16.msra.mxu0 %v1249
        %1268 = vmatprep.subr.bf16.mxu0 0
        %1269 = vmatpush1.bf16.msra.mxu0 %v1250
        %1270 = vmatprep.subr.bf16.mxu0 0
        %1271 = vmatpush1.bf16.msra.mxu0 %v1251
        %1272 = vmatprep.subr.bf16.mxu0 0
        %1273 = vmatpush1.bf16.msra.mxu0 %v1252
        %1274 = vmatprep.subr.bf16.mxu0 0
        %1275 = vmatpush1.bf16.msra.mxu0 %v1253
        %1276 = vmatprep.subr.bf16.mxu0 0
        %1277 = vmatpush1.bf16.msra.mxu0 %v1254
        %1278 = vmatprep.subr.bf16.mxu0 0
        %1279 = vmatpush1.bf16.msra.mxu0 %v1255
        %1280 = vmatprep.subr.bf16.mxu0 0
        %1281 = vmatpush1.bf16.msra.mxu0 0
        %1282 = vmatprep.subr.bf16.mxu0 0
        %1283 = vmatpush1.bf16.msra.mxu0 0
        %1284 = vmatprep.subr.bf16.mxu0 0
        %1285 = vmatpush1.bf16.msra.mxu0 0
        %1286 = vmatprep.subr.bf16.mxu0 0
        %1287 = vmatpush1.bf16.msra.mxu0 0
        %1288 = vmatprep.subr.bf16.mxu0 0
        %1289 = vmatpush1.bf16.msra.mxu0 0
        %1290 = vmatprep.subr.bf16.mxu0 0
        %1291 = vmatpush1.bf16.msra.mxu0 0
        %1292 = vmatprep.subr.bf16.mxu0 0
        %1293 = vmatpush1.bf16.msra.mxu0 0
        %1294 = vmatprep.subr.bf16.mxu0 0
        %1295 = vmatpush1.bf16.msra.mxu0 0
        %1296 = vmatprep.mubr.bf16.mxu0 0
        %1297 = vmatmul.mubr.bf16.gmra.mrb[0].mxu0 %v1191
        %v1298 = vpop.f32.mrb[0].mxu0
        %v1299 = vadd.f32 0.0, %v1298
        %v1300 = vpop.f32.mrb[0].mxu0
        %v1301 = vpop.f32.mrb[0].mxu0
        %v1302 = vadd.f32 0.0, %v1301
        %v1303 = vpop.f32.mrb[0].mxu0
        %1304 = vmatprep.mubr.bf16.mxu0 0
        %1305 = vmatmul.mubr.bf16.gmra.mrb[0].mxu0 %v1192
        %v1306 = vpop.f32.mrb[0].mxu0
        %v1307 = vadd.f32 0.0, %v1306
        %v1308 = vpop.f32.mrb[0].mxu0
        %v1309 = vpop.f32.mrb[0].mxu0
        %v1310 = vadd.f32 0.0, %v1309
        %v1311 = vpop.f32.mrb[0].mxu0
        %1312 = vmatprep.mubr.bf16.mxu0 0
        %1313 = vmatmul.mubr.bf16.gmra.mrb[0].mxu0 %v1193
        %v1314 = vpop.f32.mrb[0].mxu0
        %v1315 = vadd.f32 0.0, %v1314
        %v1316 = vpop.f32.mrb[0].mxu0
        %v1317 = vpop.f32.mrb[0].mxu0
        %v1318 = vadd.f32 0.0, %v1317
        %v1319 = vpop.f32.mrb[0].mxu0
        %1320 = vmatprep.mubr.bf16.mxu0 0
        %1321 = vmatmul.mubr.bf16.gmra.mrb[0].mxu0 %v1194
        %v1322 = vpop.f32.mrb[0].mxu0
        %v1323 = vadd.f32 0.0, %v1322
        %v1324 = vpop.f32.mrb[0].mxu0
        %v1325 = vpop.f32.mrb[0].mxu0
        %v1326 = vadd.f32 0.0, %v1325
        %v1327 = vpop.f32.mrb[0].mxu0
        %1328 = vmatprep.mubr.bf16.mxu0 0
        %1329 = vmatmul.mubr.bf16.gmra.mrb[0].mxu0 %v1195
        %v1330 = vpop.f32.mrb[0].mxu0
        %v1331 = vadd.f32 0.0, %v1330
        %v1332 = vpop.f32.mrb[0].mxu0
        %v1333 = vpop.f32.mrb[0].mxu0
        %v1334 = vadd.f32 0.0, %v1333
        %v1335 = vpop.f32.mrb[0].mxu0
        %1336 = vmatprep.mubr.bf16.mxu0 0
        %1337 = vmatmul.mubr.bf16.gmra.mrb[0].mxu0 %v1196
        %v1338 = vpop.f32.mrb[0].mxu0
        %v1339 = vadd.f32 0.0, %v1338
        %v1340 = vpop.f32.mrb[0].mxu0
        %v1341 = vpop.f32.mrb[0].mxu0
        %v1342 = vadd.f32 0.0, %v1341
        %v1343 = vpop.f32.mrb[0].mxu0
        %1344 = vmatprep.mubr.bf16.mxu0 0
        %1345 = vmatmul.mubr.bf16.gmra.mrb[0].mxu0 %v1197
        %v1346 = vpop.f32.mrb[0].mxu0
        %v1347 = vadd.f32 0.0, %v1346
        %v1348 = vpop.f32.mrb[0].mxu0
        %v1349 = vpop.f32.mrb[0].mxu0
        %v1350 = vadd.f32 0.0, %v1349
        %v1351 = vpop.f32.mrb[0].mxu0
        %1352 = vmatprep.mubr.bf16.mxu0 0
        %1353 = vmatmul.mubr.bf16.gmra.mrb[0].mxu0 %v1198
        %v1354 = vpop.f32.mrb[0].mxu0
        %v1355 = vadd.f32 0.0, %v1354
        %v1356 = vpop.f32.mrb[0].mxu0
        %v1357 = vpop.f32.mrb[0].mxu0
        %v1358 = vadd.f32 0.0, %v1357
        %v1359 = vpop.f32.mrb[0].mxu0
        %1360 = vmatprep.mubr.bf16.mxu0 0
        %1361 = vmatmul.mubr.bf16.gmra.mrb[0].mxu0 %v1199
        %v1362 = vpop.f32.mrb[0].mxu0
        %v1363 = vadd.f32 0.0, %v1362
        %v1364 = vpop.f32.mrb[0].mxu0
        %v1365 = vpop.f32.mrb[0].mxu0
        %v1366 = vadd.f32 0.0, %v1365
        %v1367 = vpop.f32.mrb[0].mxu0
        %1368 = vdwg.mxu0
        %v1369 = vadd.f32 %v1130, %v1299
        %v1370 = vadd.f32 %v1131, %v1302
        %v1371 = vadd.f32 %v1132, %v1307
        %v1372 = vadd.f32 %v1133, %v1310
        %v1373 = vadd.f32 %v1134, %v1315
        %v1374 = vadd.f32 %v1135, %v1318
        %v1375 = vadd.f32 %v1136, %v1323
        %v1376 = vadd.f32 %v1137, %v1326
        %v1377 = vadd.f32 %v1138, %v1331
        %v1378 = vadd.f32 %v1139, %v1334
        %v1379 = vadd.f32 %v1140, %v1339
        %v1380 = vadd.f32 %v1141, %v1342
        %v1381 = vadd.f32 %v1142, %v1347
        %v1382 = vadd.f32 %v1143, %v1350
        %v1383 = vadd.f32 %v1144, %v1355
        %v1384 = vadd.f32 %v1145, %v1358
        %v1385 = vadd.f32 %v1146, %v1363
        %v1386 = vadd.f32 %v1147, %v1366
        %1387 = vst [vmem:[%s368] sm:$0xff] %v1369
        %1388 = vst [vmem:[%s368 + $0x8] sm:$0xff] %v1370
        %1389 = vst [vmem:[%s368 + $0x10] sm:$0xff] %v1371
        %1390 = vst [vmem:[%s368 + $0x18] sm:$0xff] %v1372
        %1391 = vst [vmem:[%s368 + $0x20] sm:$0xff] %v1373
        %1392 = vst [vmem:[%s368 + $0x28] sm:$0xff] %v1374
        %1393 = vst [vmem:[%s368 + $0x30] sm:$0xff] %v1375
        %1394 = vst [vmem:[%s368 + $0x38] sm:$0xff] %v1376
        %1395 = vst [vmem:[%s368 + $0x40] sm:$0xff] %v1377
        %1396 = vst [vmem:[%s368 + $0x48] sm:$0xff] %v1378
        %1397 = vst [vmem:[%s368 + $0x50] sm:$0xff] %v1379
        %1398 = vst [vmem:[%s368 + $0x58] sm:$0xff] %v1380
        %1399 = vst [vmem:[%s368 + $0x60] sm:$0xff] %v1381
        %1400 = vst [vmem:[%s368 + $0x68] sm:$0xff] %v1382
        %1401 = vst [vmem:[%s368 + $0x70] sm:$0xff] %v1383
        %1402 = vst [vmem:[%s368 + $0x78] sm:$0xff] %v1384
        %1403 = vst [vmem:[%s368 + $0x80] sm:$0xff] %v1385
        %1404 = vst [vmem:[%s368 + $0x88] sm:$0xff] %v1386
        %s1405 = sand.u32 %s227, 1
        %s1406 = scalar_lea.sflag [#allocation4], %s1405
        %s1407 = sand.u32 %s227, 1
        %s1408 = smul.addr %s1407, 144
        %s1409 = scalar_lea.vmem [#allocation8], %s1408
        // Predicated region
        $region69: #{tpu_custom_call.1} parent=55 // pred_check
          %p1410 = pneg %p237
        $region70: #{tpu_custom_call.1} parent=55 // pred_check_branch
          %1412 = sbr.rel (%p1410) target = $region72
        $region71: #{tpu_custom_call.1} parent=55 // pred_region
          %s1413 = smul.u32 18, %s25
          %s1415 = ssub.s32 2304, 2304
          %1416 = vsyncadd %s1406, %s1415
          %s1417 = smul.addr %s1413, 128
          %s1418 = scalar_lea.hbm %s9, %s1417
          %s1419 = sshll.u32 %s1409, 4
          %s1420 = int_to_ptr.vmem [resolvable:$true] %s1419
          %1425 = dma.vmem_to_hbm [thread:$0]  %s1420, 2304, %s1418, %s1406, 128, 128, 8
        $region72: #{tpu_custom_call.1} parent=55 // pred_fallthru
          _
      $region56: #{tpu_custom_call.1} parent=5 // pred_fallthru
        _
      %p1426 = scmp.le.s32.totalorder 2, %s20
      // Predicated region
      $region73: #{tpu_custom_call.1} parent=5 // pred_check
        %p1427 = pneg %p1426
      $region74: #{tpu_custom_call.1} parent=5 // pred_check_branch
        %1429 = sbr.rel (%p1427) target = $region76
      $region75: #{tpu_custom_call.1} parent=5 // pred_region
        %s1430 = ssub.s32 %s20, 2
        // Predicated region
        $region77: #{tpu_custom_call.1} parent=75 // pred_check
          %p1431 = pneg %p243
        $region78: #{tpu_custom_call.1} parent=75 // pred_check_branch
          %1433 = sbr.rel (%p1431) target = $region80
        $region79: #{tpu_custom_call.1} parent=75 // pred_region
          %s1434 = sand.u32 %s228, 1
          %s1435 = scalar_lea.sflag [#allocation4], %s1434
          %s1436 = sand.u32 %s228, 1
          %s1437 = smul.addr %s1436, 144
          %s1438 = scalar_lea.vmem [#allocation8], %s1437
          %1439 = dma.done %s1435, 2304
        $region80: #{tpu_custom_call.1} parent=75 // pred_fallthru
          _
      $region76: #{tpu_custom_call.1} parent=5 // pred_fallthru
        _
    $region6: #{tpu_custom_call.1} parent=1 // loop_footer
      %s24 = sadd.s32 1, %s20
    $region7: #{tpu_custom_call.1} parent=1 // loop_footer_branch
      %19 = sbr.rel target = $region3
    $region8: #{tpu_custom_call.1} parent=1 // loop_exit
      _
    %1440 = vsyncpa [#allocation3], 1
    %s1441 = scalar_lea.sflag [#allocation3], 1
    %1442 = vsyncpa %s1441, 1
    %1443 = vsyncpa [#allocation6], 1
    %1444 = vsyncpa [#allocation4], 1
    %s1445 = scalar_lea.sflag [#allocation4], 1
    %1446 = vsyncpa %s1445, 1

</llo_original>
